<compile_context>
chip_gen: v7x
topology: tpu7x:2x2x1
jax: 0.10.0
libtpu: 0.0.40
codegen_flags: <defaults>
</compile_context>

<pallas_src>
import functools
import math

import jax
import jax.numpy as jnp
from jax import lax
from jax.experimental import pallas as pl
from jax.experimental.pallas import tpu as pltpu

HALO = 8  # sublane-aligned row offset of the current chunk in the conv scratch


def _round_up(v, m):
    return ((v + m - 1) // m) * m


def _silu(x):
    # branchless, numerically stable x * sigmoid(x)
    e = jnp.exp(-jnp.abs(x))
    return x * jnp.where(x >= 0, 1.0 / (1.0 + e), e / (1.0 + e))


def _softplus(x):
    return jnp.maximum(x, 0.0) + jnp.log(1.0 + jnp.exp(-jnp.abs(x)))


def mamba2_kernel(u_ref, win_ref, cw_ref, cb_ref, dtb_ref, aneg_ref,
                  dpar_ref, normw_ref, wout_ref, out_ref,
                  state_s, xbc_s):
    f32 = jnp.float32
    bf16 = jnp.bfloat16
    c = pl.program_id(1)                     # chunk index along the sequence

    Q = u_ref.shape[1]                       # chunk length (time tile)
    DI = normw_ref.shape[1]                  # d_inner
    H = dtb_ref.shape[1]                     # nheads
    P = DI // H                              # headdim
    K, CVp = cw_ref.shape                    # conv taps, padded conv channels
    DIp = _round_up(DI, 128)
    Np = (CVp - DIp) // 2                    # padded d_state block width
    N = state_s.shape[0]                     # d_state

    # ---- reset per-sequence carries (SSM state + conv halo rows) -----------
    @pl.when(c == 0)
    def _():
        state_s[...] = jnp.zeros(state_s.shape, f32)
        xbc_s[0:HALO, :] = jnp.zeros((HALO, CVp), f32)

    # ---- fused in_proj: one bf16 MXU matmul, f32 accumulation --------------
    # W_in column layout (128-aligned blocks): [ z | x | B | C | dt ]
    zxbcdt = jnp.dot(u_ref[0], win_ref[...], preferred_element_type=f32)
    z = zxbcdt[:, 0:DI]                                        # (Q, DI)
    xBC = zxbcdt[:, DIp:DIp + CVp]                             # (Q, CVp)
    dt = _softplus(zxbcdt[:, DIp + CVp:DIp + CVp + H] + dtb_ref[...])  # (Q, H)

    # ---- causal depthwise conv1d + SiLU (K-1 row halo carried in xbc_s) ----
    # Chunk is stored at the sublane-aligned row 8; the last tap reads the
    # in-register xBC directly (one fewer (Q,CVp) scratch reload).
    xbc_s[HALO:HALO + Q, :] = xBC
    acc = cb_ref[...] + cw_ref[K - 1:K, :] * xBC
    for k in range(K - 1):
        s0 = HALO - (K - 1) + k
        acc = acc + cw_ref[k:k + 1, :] * xbc_s[s0:s0 + Q, :]
    xbc_act = _silu(acc)
    # next chunk's left halo comes from the in-register value (no overlap)
    xbc_s[HALO - (K - 1):HALO, :] = xBC[Q - (K - 1):Q, :]

    x = xbc_act[:, 0:DI]                                       # (Q, DI)
    Bm = xbc_act[:, DIp:DIp + N]                               # (Q, N)
    Cm = xbc_act[:, DIp + Np:DIp + Np + N]                     # (Q, N)

    # ---- chunked SSD selective scan -----------------------------------------
    row = lax.broadcasted_iota(jnp.int32, (Q, Q), 0)
    col = lax.broadcasted_iota(jnp.int32, (Q, Q), 1)
    tri_b = col <= row                       # inclusive lower triangle (bool)
    tri = tri_b.astype(f32)
    triU = (col >= row).astype(f32)          # inclusive upper triangle

    # per-step log-decay for all heads at once: a[t,h] = dt[t,h] * A_h (<= 0)
    a_all = dt * aneg_ref[...]                                       # (Q, H)
    cA = jnp.dot(tri, a_all, preferred_element_type=f32)             # (Q, H)
    cA_T = lax.dot_general(a_all, triU, (((0,), (0,)), ((), ())),
                           preferred_element_type=f32)               # (H, Q)
    A_tot = cA[Q - 1:Q, :]                                           # (1, H)
    exp_cA = jnp.exp(cA)                                             # (Q, H)
    w_state = jnp.exp(A_tot - cA) * dt                               # (Q, H)

    # G[t, s] = C_t . B_s  (shared across heads, ngroups == 1)
    G = lax.dot_general(Cm.astype(bf16), Bm.astype(bf16),
                        (((1,), (1,)), ((), ())),
                        preferred_element_type=f32)                  # (Q, Q)
    # head-fused inter-chunk term: (Q,N) @ (N,DI) against the carried state
    Yb = jnp.dot(Cm.astype(bf16), state_s[...].astype(bf16),
                 preferred_element_type=f32)                         # (Q, DI)

    y_blocks = []
    xw_blocks = []
    # TODO(synk): for large H switch to lax.fori_loop (unroll 2-4) over head
    # blocks with scratch-resident y/xw to bound vreg live ranges; also do the
    # decay exp / silu in bf16 on v6e/v7x (keep f32 on v5e, no bf16 EUP/VPU).
    for h in range(H):
        # decay[t,s] = exp(cA[t]-cA[s]) on/below the diagonal, else 0
        diff = jnp.where(tri_b, cA[:, h:h + 1] - cA_T[h:h + 1, :], -1e30)
        dec = jnp.exp(diff)                                          # (Q, Q)
        dt_h = dt[:, h:h + 1]                                        # (Q, 1)
        Xh = x[:, h * P:(h + 1) * P]                                 # (Q, P)
        Xd = dt_h * Xh                                               # dt_s * x_s
        y_intra = jnp.dot((G * dec).astype(bf16), Xd.astype(bf16),
                          preferred_element_type=f32)                # (Q, P)
        y_inter = exp_cA[:, h:h + 1] * Yb[:, h * P:(h + 1) * P]
        y_blocks.append(y_intra + y_inter + dpar_ref[h] * Xh)
        # per-(t,h) weight for the fused state update matmul below
        xw_blocks.append(w_state[:, h:h + 1] * Xh)
        # decay the carried state for this head (old state already used in Yb)
        state_s[:, h * P:(h + 1) * P] = (jnp.exp(A_tot[:, h:h + 1])
                                         * state_s[:, h * P:(h + 1) * P])

    y = jnp.concatenate(y_blocks, axis=1)                            # (Q, DI)
    Xw = jnp.concatenate(xw_blocks, axis=1)                          # (Q, DI)
    # head-fused end-of-chunk state contribution: (N,Q) @ (Q,DI)
    dS = lax.dot_general(Bm.astype(bf16), Xw.astype(bf16),
                         (((0,), (0,)), ((), ())),
                         preferred_element_type=f32)                 # (N, DI)
    state_s[...] = state_s[...] + dS

    # ---- gated RMSNorm (norm_before_gate=False) + out_proj ------------------
    yz = y * _silu(z)
    var = jnp.mean(yz * yz, axis=-1, keepdims=True)
    y_n = yz * lax.rsqrt(var + 1e-5) * normw_ref[...]
    out = jnp.dot(y_n.astype(bf16), wout_ref[...],
                  preferred_element_type=f32)                        # (Q, Dm)
    out_ref[0] = out.astype(out_ref.dtype)


def make_params(key, d_model, d_state=128, d_conv=4, expand=2, headdim=128,
                ngroups=1, dt_min=1e-3, dt_max=0.1, dt_init_floor=1e-4,
                A_init_range=(1.0, 16.0)):
    """Init Mamba2Simple parameters and pack them in kernel-friendly layout."""
    assert ngroups == 1  # TODO(synk): grouped B/C (ngroups > 1) not implemented
    d_inner = expand * d_model
    assert d_inner % headdim == 0
    nheads = d_inner // headdim
    d_in_proj = 2 * d_inner + 2 * ngroups * d_state + nheads
    conv_dim = d_inner + 2 * ngroups * d_state

    ks = jax.random.split(key, 6)
    b_in = 1.0 / math.sqrt(d_model)
    W_in = jax.random.uniform(ks[0], (d_in_proj, d_model), jnp.float32, -b_in, b_in)
    b_cv = 1.0 / math.sqrt(d_conv)
    conv_w = jax.random.uniform(ks[1], (conv_dim, d_conv), jnp.float32, -b_cv, b_cv)
    conv_b = jax.random.uniform(ks[2], (conv_dim,), jnp.float32, -b_cv, b_cv)

    # dt_bias init exactly as in the module
    dt = jnp.exp(jax.random.uniform(ks[3], (nheads,), jnp.float32)
                 * (math.log(dt_max) - math.log(dt_min)) + math.log(dt_min))
    dt = jnp.maximum(dt, dt_init_floor)
    dt_bias = dt + jnp.log(-jnp.expm1(-dt))

    A = jax.random.uniform(ks[4], (nheads,), jnp.float32,
                           A_init_range[0], A_init_range[1])
    A_log = jnp.log(A)
    D_param = jnp.ones((nheads,), jnp.float32)
    norm_w = jnp.ones((d_inner,), jnp.float32)
    b_out = 1.0 / math.sqrt(d_inner)
    W_out = jax.random.uniform(ks[5], (d_model, d_inner), jnp.float32, -b_out, b_out)

    DI, N, H = d_inner, ngroups * d_state, nheads
    DIp, Np, Hp = _round_up(DI, 128), _round_up(N, 128), _round_up(H, 128)

    def pad_cols(w, width):
        return jnp.pad(w, ((0, 0), (0, width - w.shape[1])))

    W_in_T = W_in.T                         # (D, d_in_proj): [z | x | B | C | dt]
    Win = jnp.concatenate([
        pad_cols(W_in_T[:, 0:DI], DIp),                        # z
        pad_cols(W_in_T[:, DI:2 * DI], DIp),                   # x
        pad_cols(W_in_T[:, 2 * DI:2 * DI + N], Np),            # B
        pad_cols(W_in_T[:, 2 * DI + N:2 * DI + 2 * N], Np),    # C
        pad_cols(W_in_T[:, 2 * DI + 2 * N:], Hp),              # dt
    ], axis=1).astype(jnp.bfloat16)         # (D, 2*DIp + 2*Np + Hp)

    cw_t = conv_w.T                         # (K, conv_dim): [x | B | C]
    conv_w_p = jnp.concatenate([
        pad_cols(cw_t[:, 0:DI], DIp),
        pad_cols(cw_t[:, DI:DI + N], Np),
        pad_cols(cw_t[:, DI + N:], Np),
    ], axis=1)                              # (K, DIp + 2*Np)
    cb = conv_b[None, :]
    conv_b_p = jnp.concatenate([
        pad_cols(cb[:, 0:DI], DIp),
        pad_cols(cb[:, DI:DI + N], Np),
        pad_cols(cb[:, DI + N:], Np),
    ], axis=1)                              # (1, DIp + 2*Np)

    return dict(
        Win=Win,                                     # packed in_proj, bf16
        conv_w=conv_w_p,                             # (K, CVp)
        conv_b=conv_b_p,                             # (1, CVp)
        dtb=dt_bias[None, :],                        # (1, H)
        aneg=(-jnp.exp(A_log))[None, :],             # (1, H)   A = -exp(A_log)
        Dp=D_param,                                  # (H,)  -> SMEM scalars
        normw=norm_w[None, :],                       # (1, DI)
        WoutT=W_out.T.astype(jnp.bfloat16),          # (DI, D) bf16
    )


@functools.partial(jax.jit, static_argnames=("d_state", "chunk"))
def mamba2_forward(u, params, d_state, chunk=128):
    Bsz, L, Dm = u.shape
    DI = params["normw"].shape[1]
    K, CVp = params["conv_w"].shape
    N = d_state

    Q = min(chunk, L)                       # chunk / sequence-tile length
    assert L % Q == 0, "seqlen must be divisible by the chunk size"
    assert Q % 8 == 0 and Q >= K - 1
    assert K - 1 <= HALO

    order = ["Win", "conv_w", "conv_b", "dtb", "aneg", "Dp", "normw", "WoutT"]
    plist = [params[k] for k in order]

    def const_spec(shape):
        # Grid-invariant weights: constant index map -> DMA'd only once.
        nd = len(shape)
        return pl.BlockSpec(shape, lambda b, c, _nd=nd: (0,) * _nd)

    wspecs = []
    for name, p in zip(order, plist):
        if name == "Dp":
            wspecs.append(pl.BlockSpec(memory_space=pltpu.MemorySpace.SMEM))
        else:
            wspecs.append(const_spec(p.shape))

    in_specs = [pl.BlockSpec((1, Q, Dm), lambda b, c: (b, c, 0))] + wspecs

    grid_spec = pltpu.PrefetchScalarGridSpec(
        num_scalar_prefetch=0,
        # Batch axis is "parallel" (megacore); the chunk axis carries the SSM
        # state / conv halo in scratch and must NEVER be promoted to parallel.
        grid=(Bsz, L // Q),
        in_specs=in_specs,
        out_specs=pl.BlockSpec((1, Q, Dm), lambda b, c: (b, c, 0)),
        scratch_shapes=[
            pltpu.VMEM((N, DI), jnp.float32),            # SSM state (N, d_inner)
            pltpu.VMEM((Q + HALO, CVp), jnp.float32),    # conv tile + halo rows
        ],
    )
    # TODO(synk): pipeline_mode=pl.Buffered(1) on the grid-invariant weight
    # specs would drop their second VMEM buffer; for real model sizes
    # (d_model >= 2k, v7x's 64 MiB VMEM) tile Win/WoutT along d_model instead
    # of keeping them VMEM-resident, pad d_model to a multiple of 128 and
    # consider a bf16 output for lane-dense, cheaper writeback.
    return pl.pallas_call(
        mamba2_kernel,
        out_shape=jax.ShapeDtypeStruct((Bsz, L, Dm), jnp.float32),
        grid_spec=grid_spec,
        compiler_params=pltpu.CompilerParams(
            dimension_semantics=("parallel", "arbitrary"),
            vmem_limit_bytes=32 * 1024 * 1024),
    )(u.astype(jnp.bfloat16), *plist)


if __name__ == "__main__":
    # Small but lane/MXU-friendly config: d_model=128, expand=2 -> d_inner=256,
    # headdim=128 -> nheads=2, d_state=128, d_conv=4, ngroups=1.
    # seqlen=32 with chunk=16 -> 2 chunks/sequence, exercising the state + conv
    # halo carry across sequence tiles.  (Use chunk>=128 in production.)
    d_model, d_state, d_conv, expand, headdim = 128, 128, 4, 2, 128
    batch, seqlen, chunk = 2, 32, 16

    key = jax.random.PRNGKey(0)
    kp, ku = jax.random.split(key)
    params = make_params(kp, d_model, d_state=d_state, d_conv=d_conv,
                         expand=expand, headdim=headdim)
    u = jax.random.normal(ku, (batch, seqlen, d_model), dtype=jnp.float32)

    out = mamba2_forward(u, params, d_state=d_state, chunk=chunk)
    out = jax.block_until_ready(out)

    assert out.shape == u.shape, (out.shape, u.shape)
    assert bool(jnp.all(jnp.isfinite(out)))
    print("KERNEL_OK")
</pallas_src>

<mosaic_0001>
module attributes {stable_mosaic.version = 11 : i64} {
  func.func @mamba2_kernel(%arg0: i32, %arg1: i32, %arg2: memref<1x16x128xbf16, #tpu.memory_space<vmem>>, %arg3: memref<128x896xbf16, #tpu.memory_space<vmem>>, %arg4: memref<4x512xf32, #tpu.memory_space<vmem>>, %arg5: memref<1x512xf32, #tpu.memory_space<vmem>>, %arg6: memref<1x2xf32, #tpu.memory_space<vmem>>, %arg7: memref<1x2xf32, #tpu.memory_space<vmem>>, %arg8: memref<2xf32, #tpu.memory_space<smem>>, %arg9: memref<1x256xf32, #tpu.memory_space<vmem>>, %arg10: memref<256x128xbf16, #tpu.memory_space<vmem>>, %arg11: memref<1x16x128xf32, #tpu.memory_space<vmem>>, %arg12: memref<128x256xf32, #tpu.memory_space<vmem>>, %arg13: memref<24x512xf32, #tpu.memory_space<vmem>>) attributes {dimension_semantics = [#tpu.dimension_semantics<parallel>, #tpu.dimension_semantics<arbitrary>], iteration_bounds = array<i64: 2, 2>, scalar_prefetch = 0 : i64, scratch_operands = 2 : i64, tpu.core_type = #tpu.core_type<tc>, window_params = [{transform_indices = @transform_0, window_bounds = array<i64: 1, 16, 128>}, {pipeline_mode = #tpu.pipeline_mode<synchronous>, transform_indices = @transform_1, window_bounds = array<i64: 128, 896>}, {pipeline_mode = #tpu.pipeline_mode<synchronous>, transform_indices = @transform_2, window_bounds = array<i64: 4, 512>}, {pipeline_mode = #tpu.pipeline_mode<synchronous>, transform_indices = @transform_3, window_bounds = array<i64: 1, 512>}, {pipeline_mode = #tpu.pipeline_mode<synchronous>, transform_indices = @transform_4, window_bounds = array<i64: 1, 2>}, {pipeline_mode = #tpu.pipeline_mode<synchronous>, transform_indices = @transform_5, window_bounds = array<i64: 1, 2>}, {transform_indices = @transform_6, window_bounds = array<i64: 2>}, {pipeline_mode = #tpu.pipeline_mode<synchronous>, transform_indices = @transform_7, window_bounds = array<i64: 1, 256>}, {pipeline_mode = #tpu.pipeline_mode<synchronous>, transform_indices = @transform_8, window_bounds = array<i64: 256, 128>}, {transform_indices = @transform_9, window_bounds = array<i64: 1, 16, 128>}]} {
    %c0_i32 = arith.constant 0 : i32
    %0 = arith.cmpi eq, %arg1, %c0_i32 : i32
    %1 = arith.extui %0 : i1 to i32
    %c0_i32_0 = arith.constant 0 : i32
    %2 = arith.cmpi ne, %1, %c0_i32_0 : i32
    scf.if %2 {
      %cst_70 = arith.constant 0.000000e+00 : f32
      %202 = vector.broadcast %cst_70 : f32 to vector<128x256xf32>
      %c0_71 = arith.constant 0 : index
      %c0_72 = arith.constant 0 : index
      %203 = vector.load %arg12[%c0_71, %c0_72] : memref<128x256xf32, #tpu.memory_space<vmem>>, vector<128x256xf32>
      tpu.vector_store %arg12[%c0_71, %c0_72], %202 {strides = array<i32>} : memref<128x256xf32, #tpu.memory_space<vmem>>, vector<128x256xf32>,
      %cst_73 = arith.constant 0.000000e+00 : f32
      %204 = vector.broadcast %cst_73 : f32 to vector<8x512xf32>
      %c0_74 = arith.constant 0 : index
      %c0_75 = arith.constant 0 : index
      %205 = vector.load %arg13[%c0_74, %c0_75] : memref<24x512xf32, #tpu.memory_space<vmem>>, vector<8x512xf32>
      tpu.vector_store %arg13[%c0_74, %c0_75], %204 {strides = array<i32>} : memref<24x512xf32, #tpu.memory_space<vmem>>, vector<8x512xf32>,
    } else {
    }
    %c0 = arith.constant 0 : index
    %c0_1 = arith.constant 0 : index
    %c0_2 = arith.constant 0 : index
    %3 = vector.load %arg2[%c0, %c0_1, %c0_2] : memref<1x16x128xbf16, #tpu.memory_space<vmem>>, vector<1x16x128xbf16>
    %4 = vector.shape_cast %3 : vector<1x16x128xbf16> to vector<16x128xbf16>
    %c0_3 = arith.constant 0 : index
    %c0_4 = arith.constant 0 : index
    %5 = vector.load %arg3[%c0_3, %c0_4] : memref<128x896xbf16, #tpu.memory_space<vmem>>, vector<128x896xbf16>
    %cst = arith.constant dense<0.000000e+00> : vector<16x896xf32>
    %6 = tpu.matmul %4, %5, %cst {dimension_numbers = #tpu.dot_dimension_numbers<[1], [0], [0], [1], [0, 0, 1, 1], [], []>} : vector<16x128xbf16>, vector<128x896xbf16>, vector<16x896xf32> -> vector<16x896xf32>
    %7 = vector.extract_strided_slice %6 {offsets = [0, 0], sizes = [16, 256], strides = [1, 1]} : vector<16x896xf32> to vector<16x256xf32>
    %8 = vector.extract_strided_slice %6 {offsets = [0, 256], sizes = [16, 512], strides = [1, 1]} : vector<16x896xf32> to vector<16x512xf32>
    %9 = vector.extract_strided_slice %6 {offsets = [0, 768], sizes = [16, 2], strides = [1, 1]} : vector<16x896xf32> to vector<16x2xf32>
    %c0_5 = arith.constant 0 : index
    %c0_6 = arith.constant 0 : index
    %10 = vector.load %arg6[%c0_5, %c0_6] : memref<1x2xf32, #tpu.memory_space<vmem>>, vector<1x2xf32>
    %11 = vector.broadcast %10 : vector<1x2xf32> to vector<16x2xf32>
    %12 = arith.addf %9, %11 : vector<16x2xf32>
    %cst_7 = arith.constant 0.000000e+00 : f32
    %13 = vector.broadcast %cst_7 : f32 to vector<16x2xf32>
    %14 = arith.maximumf %12, %13 : vector<16x2xf32>
    %15 = math.absf %12 : vector<16x2xf32>
    %cst_8 = arith.constant 0.000000e+00 : f32
    %16 = vector.broadcast %cst_8 : f32 to vector<16x2xf32>
    %17 = arith.subf %16, %15 : vector<16x2xf32>
    %18 = math.exp %17 : vector<16x2xf32>
    %cst_9 = arith.constant 1.000000e+00 : f32
    %19 = vector.broadcast %cst_9 : f32 to vector<16x2xf32>
    %20 = arith.addf %19, %18 : vector<16x2xf32>
    %21 = math.log %20 : vector<16x2xf32>
    %22 = arith.addf %14, %21 : vector<16x2xf32>
    %c8 = arith.constant 8 : index
    %c0_10 = arith.constant 0 : index
    %23 = vector.load %arg13[%c8, %c0_10] : memref<24x512xf32, #tpu.memory_space<vmem>>, vector<16x512xf32>
    tpu.vector_store %arg13[%c8, %c0_10], %8 {strides = array<i32>} : memref<24x512xf32, #tpu.memory_space<vmem>>, vector<16x512xf32>,
    %c0_11 = arith.constant 0 : index
    %c0_12 = arith.constant 0 : index
    %24 = vector.load %arg5[%c0_11, %c0_12] : memref<1x512xf32, #tpu.memory_space<vmem>>, vector<1x512xf32>
    %c3 = arith.constant 3 : index
    %c0_13 = arith.constant 0 : index
    %25 = vector.load %arg4[%c3, %c0_13] : memref<4x512xf32, #tpu.memory_space<vmem>>, vector<1x512xf32>
    %26 = vector.broadcast %25 : vector<1x512xf32> to vector<16x512xf32>
    %27 = arith.mulf %26, %8 : vector<16x512xf32>
    %28 = vector.broadcast %24 : vector<1x512xf32> to vector<16x512xf32>
    %29 = arith.addf %28, %27 : vector<16x512xf32>
    %c0_14 = arith.constant 0 : index
    %c0_15 = arith.constant 0 : index
    %30 = vector.load %arg4[%c0_14, %c0_15] : memref<4x512xf32, #tpu.memory_space<vmem>>, vector<1x512xf32>
    %c5 = arith.constant 5 : index
    %c0_16 = arith.constant 0 : index
    %31 = vector.load %arg13[%c5, %c0_16] : memref<24x512xf32, #tpu.memory_space<vmem>>, vector<16x512xf32>
    %32 = vector.broadcast %30 : vector<1x512xf32> to vector<16x512xf32>
    %33 = arith.mulf %32, %31 : vector<16x512xf32>
    %34 = arith.addf %29, %33 : vector<16x512xf32>
    %c1 = arith.constant 1 : index
    %c0_17 = arith.constant 0 : index
    %35 = vector.load %arg4[%c1, %c0_17] : memref<4x512xf32, #tpu.memory_space<vmem>>, vector<1x512xf32>
    %c6 = arith.constant 6 : index
    %c0_18 = arith.constant 0 : index
    %36 = vector.load %arg13[%c6, %c0_18] : memref<24x512xf32, #tpu.memory_space<vmem>>, vector<16x512xf32>
    %37 = vector.broadcast %35 : vector<1x512xf32> to vector<16x512xf32>
    %38 = arith.mulf %37, %36 : vector<16x512xf32>
    %39 = arith.addf %34, %38 : vector<16x512xf32>
    %c2 = arith.constant 2 : index
    %c0_19 = arith.constant 0 : index
    %40 = vector.load %arg4[%c2, %c0_19] : memref<4x512xf32, #tpu.memory_space<vmem>>, vector<1x512xf32>
    %c7 = arith.constant 7 : index
    %c0_20 = arith.constant 0 : index
    %41 = vector.load %arg13[%c7, %c0_20] : memref<24x512xf32, #tpu.memory_space<vmem>>, vector<16x512xf32>
    %42 = vector.broadcast %40 : vector<1x512xf32> to vector<16x512xf32>
    %43 = arith.mulf %42, %41 : vector<16x512xf32>
    %44 = arith.addf %39, %43 : vector<16x512xf32>
    %45 = math.absf %44 : vector<16x512xf32>
    %cst_21 = arith.constant 0.000000e+00 : f32
    %46 = vector.broadcast %cst_21 : f32 to vector<16x512xf32>
    %47 = arith.subf %46, %45 : vector<16x512xf32>
    %48 = math.exp %47 : vector<16x512xf32>
    %cst_22 = arith.constant 0.000000e+00 : f32
    %49 = vector.broadcast %cst_22 : f32 to vector<16x512xf32>
    %50 = arith.cmpf oge, %44, %49 : vector<16x512xf32>
    %cst_23 = arith.constant 1.000000e+00 : f32
    %51 = vector.broadcast %cst_23 : f32 to vector<16x512xf32>
    %52 = arith.addf %51, %48 : vector<16x512xf32>
    %cst_24 = arith.constant 1.000000e+00 : f32
    %53 = vector.broadcast %cst_24 : f32 to vector<16x512xf32>
    %54 = arith.divf %53, %52 : vector<16x512xf32>
    %cst_25 = arith.constant 1.000000e+00 : f32
    %55 = vector.broadcast %cst_25 : f32 to vector<16x512xf32>
    %56 = arith.addf %55, %48 : vector<16x512xf32>
    %57 = arith.divf %48, %56 : vector<16x512xf32>
    %58 = arith.select %50, %54, %57 : vector<16x512xi1>, vector<16x512xf32>
    %59 = arith.mulf %44, %58 : vector<16x512xf32>
    %60 = vector.extract_strided_slice %8 {offsets = [13, 0], sizes = [3, 512], strides = [1, 1]} : vector<16x512xf32> to vector<3x512xf32>
    %c5_26 = arith.constant 5 : index
    %c0_27 = arith.constant 0 : index
    %61 = vector.load %arg13[%c5_26, %c0_27] : memref<24x512xf32, #tpu.memory_space<vmem>>, vector<3x512xf32>
    tpu.vector_store %arg13[%c5_26, %c0_27], %60 {strides = array<i32>} : memref<24x512xf32, #tpu.memory_space<vmem>>, vector<3x512xf32>,
    %62 = vector.extract_strided_slice %59 {offsets = [0, 0], sizes = [16, 256], strides = [1, 1]} : vector<16x512xf32> to vector<16x256xf32>
    %63 = vector.extract_strided_slice %59 {offsets = [0, 256], sizes = [16, 128], strides = [1, 1]} : vector<16x512xf32> to vector<16x128xf32>
    %64 = vector.extract_strided_slice %59 {offsets = [0, 384], sizes = [16, 128], strides = [1, 1]} : vector<16x512xf32> to vector<16x128xf32>
    %65 = tpu.iota {dimensions = array<i32: 0>} : vector<16x16xi32>
    %66 = tpu.iota {dimensions = array<i32: 1>} : vector<16x16xi32>
    %67 = arith.cmpi sle, %66, %65 : vector<16x16xi32>
    %68 = arith.extui %67 : vector<16x16xi1> to vector<16x16xi32>
    %69 = arith.sitofp %68 : vector<16x16xi32> to vector<16x16xf32>
    %70 = arith.cmpi sge, %66, %65 : vector<16x16xi32>
    %71 = arith.extui %70 : vector<16x16xi1> to vector<16x16xi32>
    %72 = arith.sitofp %71 : vector<16x16xi32> to vector<16x16xf32>
    %c0_28 = arith.constant 0 : index
    %c0_29 = arith.constant 0 : index
    %73 = vector.load %arg7[%c0_28, %c0_29] : memref<1x2xf32, #tpu.memory_space<vmem>>, vector<1x2xf32>
    %74 = vector.broadcast %73 : vector<1x2xf32> to vector<16x2xf32>
    %75 = arith.mulf %22, %74 : vector<16x2xf32>
    %cst_30 = arith.constant dense<0.000000e+00> : vector<16x2xf32>
    %76 = tpu.matmul %69, %75, %cst_30 {dimension_numbers = #tpu.dot_dimension_numbers<[1], [0], [0], [1], [0, 0, 1, 1], [], []>} : vector<16x16xf32>, vector<16x2xf32>, vector<16x2xf32> -> vector<16x2xf32>
    %cst_31 = arith.constant dense<0.000000e+00> : vector<2x16xf32>
    %77 = tpu.matmul %75, %72, %cst_31 {dimension_numbers = #tpu.dot_dimension_numbers<[0], [0], [1], [1], [0, 1, 1, 1], [], []>} : vector<16x2xf32>, vector<16x16xf32>, vector<2x16xf32> -> vector<2x16xf32>
    %78 = vector.extract_strided_slice %76 {offsets = [15, 0], sizes = [1, 2], strides = [1, 1]} : vector<16x2xf32> to vector<1x2xf32>
    %79 = math.exp %76 : vector<16x2xf32>
    %80 = vector.broadcast %78 : vector<1x2xf32> to vector<16x2xf32>
    %81 = arith.subf %80, %76 : vector<16x2xf32>
    %82 = math.exp %81 : vector<16x2xf32>
    %83 = arith.mulf %82, %22 : vector<16x2xf32>
    %84 = arith.truncf %64 : vector<16x128xf32> to vector<16x128xbf16>
    %85 = arith.truncf %63 : vector<16x128xf32> to vector<16x128xbf16>
    %cst_32 = arith.constant dense<0.000000e+00> : vector<16x16xf32>
    %86 = tpu.matmul %84, %85, %cst_32 {dimension_numbers = #tpu.dot_dimension_numbers<[1], [1], [0], [0], [0, 0, 1, 0], [], []>} : vector<16x128xbf16>, vector<16x128xbf16>, vector<16x16xf32> -> vector<16x16xf32>
    %87 = arith.truncf %64 : vector<16x128xf32> to vector<16x128xbf16>
    %c0_33 = arith.constant 0 : index
    %c0_34 = arith.constant 0 : index
    %88 = vector.load %arg12[%c0_33, %c0_34] : memref<128x256xf32, #tpu.memory_space<vmem>>, vector<128x256xf32>
    %89 = arith.truncf %88 : vector<128x256xf32> to vector<128x256xbf16>
    %cst_35 = arith.constant dense<0.000000e+00> : vector<16x256xf32>
    %90 = tpu.matmul %87, %89, %cst_35 {dimension_numbers = #tpu.dot_dimension_numbers<[1], [0], [0], [1], [0, 0, 1, 1], [], []>} : vector<16x128xbf16>, vector<128x256xbf16>, vector<16x256xf32> -> vector<16x256xf32>
    %91 = vector.extract_strided_slice %76 {offsets = [0, 0], sizes = [16, 1], strides = [1, 1]} : vector<16x2xf32> to vector<16x1xf32>
    %92 = vector.extract_strided_slice %77 {offsets = [0, 0], sizes = [1, 16], strides = [1, 1]} : vector<2x16xf32> to vector<1x16xf32>
    %93 = vector.broadcast %91 : vector<16x1xf32> to vector<16x16xf32>
    %94 = vector.broadcast %92 : vector<1x16xf32> to vector<16x16xf32>
    %95 = arith.subf %93, %94 : vector<16x16xf32>
    %cst_36 = arith.constant -1.000000e+30 : f32
    %96 = vector.broadcast %cst_36 : f32 to vector<16x16xf32>
    %97 = arith.select %67, %95, %96 : vector<16x16xi1>, vector<16x16xf32>
    %98 = math.exp %97 : vector<16x16xf32>
    %99 = vector.extract_strided_slice %22 {offsets = [0, 0], sizes = [16, 1], strides = [1, 1]} : vector<16x2xf32> to vector<16x1xf32>
    %100 = vector.extract_strided_slice %62 {offsets = [0, 0], sizes = [16, 128], strides = [1, 1]} : vector<16x256xf32> to vector<16x128xf32>
    %101 = vector.broadcast %99 : vector<16x1xf32> to vector<16x128xf32>
    %102 = arith.mulf %101, %100 : vector<16x128xf32>
    %103 = arith.mulf %86, %98 : vector<16x16xf32>
    %104 = arith.truncf %103 : vector<16x16xf32> to vector<16x16xbf16>
    %105 = arith.truncf %102 : vector<16x128xf32> to vector<16x128xbf16>
    %cst_37 = arith.constant dense<0.000000e+00> : vector<16x128xf32>
    %106 = tpu.matmul %104, %105, %cst_37 {dimension_numbers = #tpu.dot_dimension_numbers<[1], [0], [0], [1], [0, 0, 1, 1], [], []>} : vector<16x16xbf16>, vector<16x128xbf16>, vector<16x128xf32> -> vector<16x128xf32>
    %107 = vector.extract_strided_slice %79 {offsets = [0, 0], sizes = [16, 1], strides = [1, 1]} : vector<16x2xf32> to vector<16x1xf32>
    %108 = vector.extract_strided_slice %90 {offsets = [0, 0], sizes = [16, 128], strides = [1, 1]} : vector<16x256xf32> to vector<16x128xf32>
    %109 = vector.broadcast %107 : vector<16x1xf32> to vector<16x128xf32>
    %110 = arith.mulf %109, %108 : vector<16x128xf32>
    %111 = arith.addf %106, %110 : vector<16x128xf32>
    %c0_38 = arith.constant 0 : index
    %112 = memref.load %arg8[%c0_38] : memref<2xf32, #tpu.memory_space<smem>>
    %113 = vector.broadcast %112 : f32 to vector<16x128xf32>
    %114 = arith.mulf %113, %100 : vector<16x128xf32>
    %115 = arith.addf %111, %114 : vector<16x128xf32>
    %116 = vector.extract_strided_slice %83 {offsets = [0, 0], sizes = [16, 1], strides = [1, 1]} : vector<16x2xf32> to vector<16x1xf32>
    %117 = vector.broadcast %116 : vector<16x1xf32> to vector<16x128xf32>
    %118 = arith.mulf %117, %100 : vector<16x128xf32>
    %119 = vector.extract_strided_slice %78 {offsets = [0, 0], sizes = [1, 1], strides = [1, 1]} : vector<1x2xf32> to vector<1x1xf32>
    %120 = math.exp %119 : vector<1x1xf32>
    %c0_39 = arith.constant 0 : index
    %c0_40 = arith.constant 0 : index
    %121 = vector.load %arg12[%c0_39, %c0_40] : memref<128x256xf32, #tpu.memory_space<vmem>>, vector<128x128xf32>
    %122 = vector.broadcast %120 : vector<1x1xf32> to vector<128x128xf32>
    %123 = arith.mulf %122, %121 : vector<128x128xf32>
    %c0_41 = arith.constant 0 : index
    %c0_42 = arith.constant 0 : index
    %124 = vector.load %arg12[%c0_41, %c0_42] : memref<128x256xf32, #tpu.memory_space<vmem>>, vector<128x128xf32>
    tpu.vector_store %arg12[%c0_41, %c0_42], %123 {strides = array<i32>} : memref<128x256xf32, #tpu.memory_space<vmem>>, vector<128x128xf32>,
    %125 = vector.extract_strided_slice %76 {offsets = [0, 1], sizes = [16, 1], strides = [1, 1]} : vector<16x2xf32> to vector<16x1xf32>
    %126 = vector.extract_strided_slice %77 {offsets = [1, 0], sizes = [1, 16], strides = [1, 1]} : vector<2x16xf32> to vector<1x16xf32>
    %127 = vector.broadcast %125 : vector<16x1xf32> to vector<16x16xf32>
    %128 = vector.broadcast %126 : vector<1x16xf32> to vector<16x16xf32>
    %129 = arith.subf %127, %128 : vector<16x16xf32>
    %cst_43 = arith.constant -1.000000e+30 : f32
    %130 = vector.broadcast %cst_43 : f32 to vector<16x16xf32>
    %131 = arith.select %67, %129, %130 : vector<16x16xi1>, vector<16x16xf32>
    %132 = math.exp %131 : vector<16x16xf32>
    %133 = vector.extract_strided_slice %22 {offsets = [0, 1], sizes = [16, 1], strides = [1, 1]} : vector<16x2xf32> to vector<16x1xf32>
    %134 = vector.extract_strided_slice %62 {offsets = [0, 128], sizes = [16, 128], strides = [1, 1]} : vector<16x256xf32> to vector<16x128xf32>
    %135 = vector.broadcast %133 : vector<16x1xf32> to vector<16x128xf32>
    %136 = arith.mulf %135, %134 : vector<16x128xf32>
    %137 = arith.mulf %86, %132 : vector<16x16xf32>
    %138 = arith.truncf %137 : vector<16x16xf32> to vector<16x16xbf16>
    %139 = arith.truncf %136 : vector<16x128xf32> to vector<16x128xbf16>
    %cst_44 = arith.constant dense<0.000000e+00> : vector<16x128xf32>
    %140 = tpu.matmul %138, %139, %cst_44 {dimension_numbers = #tpu.dot_dimension_numbers<[1], [0], [0], [1], [0, 0, 1, 1], [], []>} : vector<16x16xbf16>, vector<16x128xbf16>, vector<16x128xf32> -> vector<16x128xf32>
    %141 = vector.extract_strided_slice %79 {offsets = [0, 1], sizes = [16, 1], strides = [1, 1]} : vector<16x2xf32> to vector<16x1xf32>
    %142 = vector.extract_strided_slice %90 {offsets = [0, 128], sizes = [16, 128], strides = [1, 1]} : vector<16x256xf32> to vector<16x128xf32>
    %143 = vector.broadcast %141 : vector<16x1xf32> to vector<16x128xf32>
    %144 = arith.mulf %143, %142 : vector<16x128xf32>
    %145 = arith.addf %140, %144 : vector<16x128xf32>
    %c1_45 = arith.constant 1 : index
    %146 = memref.load %arg8[%c1_45] : memref<2xf32, #tpu.memory_space<smem>>
    %147 = vector.broadcast %146 : f32 to vector<16x128xf32>
    %148 = arith.mulf %147, %134 : vector<16x128xf32>
    %149 = arith.addf %145, %148 : vector<16x128xf32>
    %150 = vector.extract_strided_slice %83 {offsets = [0, 1], sizes = [16, 1], strides = [1, 1]} : vector<16x2xf32> to vector<16x1xf32>
    %151 = vector.broadcast %150 : vector<16x1xf32> to vector<16x128xf32>
    %152 = arith.mulf %151, %134 : vector<16x128xf32>
    %153 = vector.extract_strided_slice %78 {offsets = [0, 1], sizes = [1, 1], strides = [1, 1]} : vector<1x2xf32> to vector<1x1xf32>
    %154 = math.exp %153 : vector<1x1xf32>
    %c0_46 = arith.constant 0 : index
    %c128 = arith.constant 128 : index
    %155 = vector.load %arg12[%c0_46, %c128] : memref<128x256xf32, #tpu.memory_space<vmem>>, vector<128x128xf32>
    %156 = vector.broadcast %154 : vector<1x1xf32> to vector<128x128xf32>
    %157 = arith.mulf %156, %155 : vector<128x128xf32>
    %c0_47 = arith.constant 0 : index
    %c128_48 = arith.constant 128 : index
    %158 = vector.load %arg12[%c0_47, %c128_48] : memref<128x256xf32, #tpu.memory_space<vmem>>, vector<128x128xf32>
    tpu.vector_store %arg12[%c0_47, %c128_48], %157 {strides = array<i32>} : memref<128x256xf32, #tpu.memory_space<vmem>>, vector<128x128xf32>,
    %159 = tpu.concatenate %115, %149 in 1 : vector<16x128xf32>, vector<16x128xf32> -> vector<16x256xf32>
    %160 = tpu.concatenate %118, %152 in 1 : vector<16x128xf32>, vector<16x128xf32> -> vector<16x256xf32>
    %161 = arith.truncf %63 : vector<16x128xf32> to vector<16x128xbf16>
    %162 = arith.truncf %160 : vector<16x256xf32> to vector<16x256xbf16>
    %cst_49 = arith.constant dense<0.000000e+00> : vector<128x256xf32>
    %163 = tpu.matmul %161, %162, %cst_49 {dimension_numbers = #tpu.dot_dimension_numbers<[0], [0], [1], [1], [0, 1, 1, 1], [], []>} : vector<16x128xbf16>, vector<16x256xbf16>, vector<128x256xf32> -> vector<128x256xf32>
    %c0_50 = arith.constant 0 : index
    %c0_51 = arith.constant 0 : index
    %164 = vector.load %arg12[%c0_50, %c0_51] : memref<128x256xf32, #tpu.memory_space<vmem>>, vector<128x256xf32>
    %165 = arith.addf %164, %163 : vector<128x256xf32>
    %c0_52 = arith.constant 0 : index
    %c0_53 = arith.constant 0 : index
    %166 = vector.load %arg12[%c0_52, %c0_53] : memref<128x256xf32, #tpu.memory_space<vmem>>, vector<128x256xf32>
    tpu.vector_store %arg12[%c0_52, %c0_53], %165 {strides = array<i32>} : memref<128x256xf32, #tpu.memory_space<vmem>>, vector<128x256xf32>,
    %167 = math.absf %7 : vector<16x256xf32>
    %cst_54 = arith.constant 0.000000e+00 : f32
    %168 = vector.broadcast %cst_54 : f32 to vector<16x256xf32>
    %169 = arith.subf %168, %167 : vector<16x256xf32>
    %170 = math.exp %169 : vector<16x256xf32>
    %cst_55 = arith.constant 0.000000e+00 : f32
    %171 = vector.broadcast %cst_55 : f32 to vector<16x256xf32>
    %172 = arith.cmpf oge, %7, %171 : vector<16x256xf32>
    %cst_56 = arith.constant 1.000000e+00 : f32
    %173 = vector.broadcast %cst_56 : f32 to vector<16x256xf32>
    %174 = arith.addf %173, %170 : vector<16x256xf32>
    %cst_57 = arith.constant 1.000000e+00 : f32
    %175 = vector.broadcast %cst_57 : f32 to vector<16x256xf32>
    %176 = arith.divf %175, %174 : vector<16x256xf32>
    %cst_58 = arith.constant 1.000000e+00 : f32
    %177 = vector.broadcast %cst_58 : f32 to vector<16x256xf32>
    %178 = arith.addf %177, %170 : vector<16x256xf32>
    %179 = arith.divf %170, %178 : vector<16x256xf32>
    %180 = arith.select %172, %176, %179 : vector<16x256xi1>, vector<16x256xf32>
    %181 = arith.mulf %7, %180 : vector<16x256xf32>
    %182 = arith.mulf %159, %181 : vector<16x256xf32>
    %183 = arith.mulf %182, %182 : vector<16x256xf32>
    %cst_59 = arith.constant dense<0.000000e+00> : vector<16xf32>
    %184 = vector.multi_reduction <add>, %183, %cst_59 [1] : vector<16x256xf32> to vector<16xf32>
    %185 = vector.shape_cast %184 : vector<16xf32> to vector<16x1xf32>
    %cst_60 = arith.constant 2.560000e+02 : f32
    %186 = vector.broadcast %cst_60 : f32 to vector<16x1xf32>
    %187 = arith.divf %185, %186 : vector<16x1xf32>
    %cst_61 = arith.constant 9.99999974E-6 : f32
    %188 = vector.broadcast %cst_61 : f32 to vector<16x1xf32>
    %189 = arith.addf %187, %188 : vector<16x1xf32>
    %190 = math.rsqrt %189 : vector<16x1xf32>
    %191 = vector.broadcast %190 : vector<16x1xf32> to vector<16x256xf32>
    %192 = arith.mulf %182, %191 : vector<16x256xf32>
    %c0_62 = arith.constant 0 : index
    %c0_63 = arith.constant 0 : index
    %193 = vector.load %arg9[%c0_62, %c0_63] : memref<1x256xf32, #tpu.memory_space<vmem>>, vector<1x256xf32>
    %194 = vector.broadcast %193 : vector<1x256xf32> to vector<16x256xf32>
    %195 = arith.mulf %192, %194 : vector<16x256xf32>
    %196 = arith.truncf %195 : vector<16x256xf32> to vector<16x256xbf16>
    %c0_64 = arith.constant 0 : index
    %c0_65 = arith.constant 0 : index
    %197 = vector.load %arg10[%c0_64, %c0_65] : memref<256x128xbf16, #tpu.memory_space<vmem>>, vector<256x128xbf16>
    %cst_66 = arith.constant dense<0.000000e+00> : vector<16x128xf32>
    %198 = tpu.matmul %196, %197, %cst_66 {dimension_numbers = #tpu.dot_dimension_numbers<[1], [0], [0], [1], [0, 0, 1, 1], [], []>} : vector<16x256xbf16>, vector<256x128xbf16>, vector<16x128xf32> -> vector<16x128xf32>
    %c0_67 = arith.constant 0 : index
    %c0_68 = arith.constant 0 : index
    %c0_69 = arith.constant 0 : index
    %199 = vector.load %arg11[%c0_67, %c0_68, %c0_69] : memref<1x16x128xf32, #tpu.memory_space<vmem>>, vector<1x16x128xf32>
    %200 = vector.shape_cast %199 : vector<1x16x128xf32> to vector<16x128xf32>
    %201 = vector.shape_cast %198 : vector<16x128xf32> to vector<1x16x128xf32>
    tpu.vector_store %arg11[%c0_67, %c0_68, %c0_69], %201 {strides = array<i32>} : memref<1x16x128xf32, #tpu.memory_space<vmem>>, vector<1x16x128xf32>,
    return
  }
  func.func @transform_0(%arg0: i32, %arg1: i32) -> (i32, i32, i32) {
    %c0_i32 = arith.constant 0 : i32
    %c0_i32_0 = arith.constant 0 : i32
    return %arg0, %arg1, %c0_i32 : i32, i32, i32
  }
  func.func @transform_1(%arg0: i32, %arg1: i32) -> (i32, i32) {
    %c0_i32 = arith.constant 0 : i32
    %c0_i32_0 = arith.constant 0 : i32
    %c0_i32_1 = arith.constant 0 : i32
    return %c0_i32, %c0_i32_0 : i32, i32
  }
  func.func @transform_2(%arg0: i32, %arg1: i32) -> (i32, i32) {
    %c0_i32 = arith.constant 0 : i32
    %c0_i32_0 = arith.constant 0 : i32
    %c0_i32_1 = arith.constant 0 : i32
    return %c0_i32, %c0_i32_0 : i32, i32
  }
  func.func @transform_3(%arg0: i32, %arg1: i32) -> (i32, i32) {
    %c0_i32 = arith.constant 0 : i32
    %c0_i32_0 = arith.constant 0 : i32
    %c0_i32_1 = arith.constant 0 : i32
    return %c0_i32, %c0_i32_0 : i32, i32
  }
  func.func @transform_4(%arg0: i32, %arg1: i32) -> (i32, i32) {
    %c0_i32 = arith.constant 0 : i32
    %c0_i32_0 = arith.constant 0 : i32
    %c0_i32_1 = arith.constant 0 : i32
    return %c0_i32, %c0_i32_0 : i32, i32
  }
  func.func @transform_5(%arg0: i32, %arg1: i32) -> (i32, i32) {
    %c0_i32 = arith.constant 0 : i32
    %c0_i32_0 = arith.constant 0 : i32
    %c0_i32_1 = arith.constant 0 : i32
    return %c0_i32, %c0_i32_0 : i32, i32
  }
  func.func @transform_6(%arg0: i32, %arg1: i32) -> i32 {
    %c0_i32 = arith.constant 0 : i32
    %c0_i32_0 = arith.constant 0 : i32
    return %c0_i32 : i32
  }
  func.func @transform_7(%arg0: i32, %arg1: i32) -> (i32, i32) {
    %c0_i32 = arith.constant 0 : i32
    %c0_i32_0 = arith.constant 0 : i32
    %c0_i32_1 = arith.constant 0 : i32
    return %c0_i32, %c0_i32_0 : i32, i32
  }
  func.func @transform_8(%arg0: i32, %arg1: i32) -> (i32, i32) {
    %c0_i32 = arith.constant 0 : i32
    %c0_i32_0 = arith.constant 0 : i32
    %c0_i32_1 = arith.constant 0 : i32
    return %c0_i32, %c0_i32_0 : i32, i32
  }
  func.func @transform_9(%arg0: i32, %arg1: i32) -> (i32, i32, i32) {
    %c0_i32 = arith.constant 0 : i32
    %c0_i32_0 = arith.constant 0 : i32
    return %arg0, %arg1, %c0_i32 : i32, i32, i32
  }
}

</mosaic_0001>

<llo_original>
// kernel: mamba2_forward.1
$region0: #{mamba2_forward.1}
  #allocation0 [shape = 'u32[]', space=smem, size = 0x4, offset = 0x4, fixed_abs, tag = 'smem constant byte address 0x4 - core index']
  #allocation1 [shape = 'u32[144,128]{1,0:T(1,128)}', space=vmem, size = 0x12000, scoped, tag = 'internal scratch']
  #allocation2 [shape = 'f32[128,256]{1,0:T(8,128)}', space=vmem, size = 0x20000, scoped, tag = 'scratch operand']
  #allocation3 [shape = 'f32[24,512]{1,0:T(8,128)}', space=vmem, size = 0xc000, scoped, tag = 'scratch operand']
  %s0 = inlined_call_operand.vmem [shape: bf16[2,32,128], index: 0, kind: input, shape index: {}]
  %s1 = inlined_call_operand.hbm [shape: bf16[128,896], index: 1, kind: input, shape index: {}]
  %s2 = inlined_call_operand.vmem [shape: f32[4,512], index: 2, kind: input, shape index: {}]
  %s3 = inlined_call_operand.vmem [shape: f32[1,512], index: 3, kind: input, shape index: {}]
  %s4 = inlined_call_operand.vmem [shape: f32[1,2], index: 4, kind: input, shape index: {}]
  %s5 = inlined_call_operand.vmem [shape: f32[1,2], index: 5, kind: input, shape index: {}]
  %s6 = inlined_call_operand.vmem [shape: f32[2], index: 6, kind: input, shape index: {}]
  %s7 = inlined_call_operand.vmem [shape: f32[1,256], index: 7, kind: input, shape index: {}]
  %s8 = inlined_call_operand.hbm [shape: bf16[256,128], index: 8, kind: input, shape index: {}]
  %s9 = inlined_call_operand.hbm [shape: f32[2,32,128], index: 9, kind: output, shape index: {}]
  %s10 = sld [smem:[#allocation0]]
  $region85: #{mamba2_forward.1} parent=0
    _
  %s12 = ssub.s32 1, %s10
  %s13 = scalar_select 0, %s12, %s10
  $region1: #{mamba2_forward.1} parent=0
    #allocation4 [shape = 'u8[229376]{0}', space=vmem, size = 0x38000, scoped, tag = 'input window, operand 1, single buffered']
    #allocation5 [shape = 's32[2]{0}', space=sflag, size = 0x8, scoped, tag = 'scoped memory for mamba2_forward.1']
    #allocation6 [shape = 's32[2]{0}', space=sflag, size = 0x8, scoped, tag = 'scoped memory for mamba2_forward.1']
    #allocation7 [shape = 's32[2]{0}', space=sflag, size = 0x8, scoped, tag = 'scoped memory for mamba2_forward.1']
    #allocation8 [shape = 'u8[512]{0}', space=smem, size = 0x200, scoped, tag = 'input window, operand 6, single buffered']
    #allocation9 [shape = 'u8[65536]{0}', space=vmem, size = 0x10000, scoped, tag = 'input window, operand 8, single buffered']
    #allocation10 [shape = 's32[1]{0}', space=sflag, size = 0x4, scoped, tag = 'scoped memory for mamba2_forward.1']
    #allocation11 [shape = 'u8[16384]{0}', space=vmem, size = 0x4000, scoped, tag = 'output window, operand 0']
    %14 = vsyncpa [#allocation5], 0
    %15 = vsyncpa [#allocation7], 0
    %16 = vsyncpa [#allocation10], 0
    %17 = vsyncpa [#allocation6], 0
    %s18 = scalar_lea.sflag [#allocation6], 1
    %19 = vsyncpa %s18, 0
    loop: start=0, step=1, limit=6
    $region2: #{mamba2_forward.1} parent=1 // loop_pre_header
      _
    $region3: #{mamba2_forward.1} parent=1 // loop_header
      %s21 = sphi 0, %s25
      %p22 = scmp.ge.s32.totalorder %s21, 6
      %s28 = sphi 0, %s40
      %s29 = sphi 0, %s36
      %s30 = sphi 0, %s28
      %s31 = sphi 0, %s29
      %s32 = sphi 0, %s30
      %s33 = sphi 0, %s31
      %s45 = sphi 0, %s47
      %s48 = sphi 0, %s45
      %s49 = sphi 0, %s48
      %s65 = sphi 0, %s49
      %s69 = sphi 0, %s69
      %s71 = sphi 0, %s69
      %s72 = sphi 0, %s71
      %s86 = sphi 0, %s72
      %s90 = sphi 0, %s90
      %s92 = sphi 0, %s90
      %s93 = sphi 0, %s92
      %s107 = sphi 0, %s93
      %s111 = sphi 0, %s111
      %s113 = sphi 0, %s111
      %s114 = sphi 0, %s113
      %s128 = sphi 0, %s114
      %s132 = sphi 0, %s132
      %s134 = sphi 0, %s132
      %s135 = sphi 0, %s134
      %s149 = sphi 0, %s135
      %s153 = sphi 0, %s153
      %s155 = sphi 0, %s153
      %s156 = sphi 0, %s155
      %s170 = sphi 0, %s156
      %s174 = sphi 0, %s174
      %s176 = sphi 0, %s174
      %s177 = sphi 0, %s176
      %s191 = sphi 0, %s177
      %s195 = sphi 0, %s195
      %s197 = sphi 0, %s195
      %s198 = sphi 0, %s197
      %s212 = sphi 0, %s198
      %s216 = sphi 0, %s216
      %s218 = sphi 0, %s216
      %s219 = sphi 0, %s218
      %s233 = sphi 0, %s219
      %s241 = sphi 0, %s243
      %s244 = sphi 0, %s241
      %s245 = sphi 0, %s244
      %s261 = sphi 0, %s245
    $region4: #{mamba2_forward.1} parent=1 // loop_header_branch
      %24 = sbr.rel (%p22) target = $region8
    $region5: #{mamba2_forward.1} parent=1 // loop_body
      %s26 = ssub.s32 %s21, 1
      %s27 = ssub.s32 %s21, 2
      %s34 = sadd.s32 1, %s29
      %p35 = scmp.ge.s32.totalorder %s34, 2
      %s36 = scalar_select %p35, 0, %s34
      %s37 = sadd.s32 1, %s28
      %s38 = scalar_select %p35, %s37, %s28
      %p39 = scmp.ge.s32.totalorder %s38, 2
      %s40 = scalar_select %p39, 0, %s38
      %s41 = ssub.s32 %s28, %s40
      %s42 = ssub.s32 %s29, %s36
      %s43 = sor.u32 %s41, %s42
      %p44 = scmp.eq.s32.totalorder %s43, 0
      %s46 = sadd.s32 %s45, 1
      %s47 = scalar_select %p44, %s45, %s46
      %p50 = pneg %p44
      %p51 = scmp.eq.s32.totalorder %s21, 3
      %p52 = por %p50, %p51
      %p53 = scmp.ne.s32.totalorder %s45, %s48
      %p54 = scmp.eq.s32.totalorder %s21, 0
      %p55 = por %p53, %p54
      %p56 = scmp.ne.s32.totalorder %s45, %s48
      %p57 = scmp.eq.s32.totalorder %s26, 3
      %p58 = por %p56, %p57
      %p59 = scmp.ne.s32.totalorder %s48, %s49
      %p60 = scmp.eq.s32.totalorder %s26, 0
      %p61 = por %p59, %p60
      %p62 = scmp.ne.s32.totalorder %s48, %s49
      %p63 = scmp.eq.s32.totalorder %s27, 3
      %p64 = por %p62, %p63
      %p66 = scmp.ne.s32.totalorder %s49, %s65
      %p67 = scmp.eq.s32.totalorder %s27, 0
      %p68 = por %p66, %p67
      %s70 = sadd.s32 %s69, 1
      %p73 = scmp.eq.s32.totalorder %s21, 3
      %p74 = scmp.ne.s32.totalorder %s69, %s71
      %p75 = scmp.eq.s32.totalorder %s21, 0
      %p76 = por %p74, %p75
      %p77 = scmp.ne.s32.totalorder %s69, %s71
      %p78 = scmp.eq.s32.totalorder %s26, 3
      %p79 = por %p77, %p78
      %p80 = scmp.ne.s32.totalorder %s71, %s72
      %p81 = scmp.eq.s32.totalorder %s26, 0
      %p82 = por %p80, %p81
      %p83 = scmp.ne.s32.totalorder %s71, %s72
      %p84 = scmp.eq.s32.totalorder %s27, 3
      %p85 = por %p83, %p84
      %p87 = scmp.ne.s32.totalorder %s72, %s86
      %p88 = scmp.eq.s32.totalorder %s27, 0
      %p89 = por %p87, %p88
      %s91 = sadd.s32 %s90, 1
      %p94 = scmp.eq.s32.totalorder %s21, 3
      %p95 = scmp.ne.s32.totalorder %s90, %s92
      %p96 = scmp.eq.s32.totalorder %s21, 0
      %p97 = por %p95, %p96
      %p98 = scmp.ne.s32.totalorder %s90, %s92
      %p99 = scmp.eq.s32.totalorder %s26, 3
      %p100 = por %p98, %p99
      %p101 = scmp.ne.s32.totalorder %s92, %s93
      %p102 = scmp.eq.s32.totalorder %s26, 0
      %p103 = por %p101, %p102
      %p104 = scmp.ne.s32.totalorder %s92, %s93
      %p105 = scmp.eq.s32.totalorder %s27, 3
      %p106 = por %p104, %p105
      %p108 = scmp.ne.s32.totalorder %s93, %s107
      %p109 = scmp.eq.s32.totalorder %s27, 0
      %p110 = por %p108, %p109
      %s112 = sadd.s32 %s111, 1
      %p115 = scmp.eq.s32.totalorder %s21, 3
      %p116 = scmp.ne.s32.totalorder %s111, %s113
      %p117 = scmp.eq.s32.totalorder %s21, 0
      %p118 = por %p116, %p117
      %p119 = scmp.ne.s32.totalorder %s111, %s113
      %p120 = scmp.eq.s32.totalorder %s26, 3
      %p121 = por %p119, %p120
      %p122 = scmp.ne.s32.totalorder %s113, %s114
      %p123 = scmp.eq.s32.totalorder %s26, 0
      %p124 = por %p122, %p123
      %p125 = scmp.ne.s32.totalorder %s113, %s114
      %p126 = scmp.eq.s32.totalorder %s27, 3
      %p127 = por %p125, %p126
      %p129 = scmp.ne.s32.totalorder %s114, %s128
      %p130 = scmp.eq.s32.totalorder %s27, 0
      %p131 = por %p129, %p130
      %s133 = sadd.s32 %s132, 1
      %p136 = scmp.eq.s32.totalorder %s21, 3
      %p137 = scmp.ne.s32.totalorder %s132, %s134
      %p138 = scmp.eq.s32.totalorder %s21, 0
      %p139 = por %p137, %p138
      %p140 = scmp.ne.s32.totalorder %s132, %s134
      %p141 = scmp.eq.s32.totalorder %s26, 3
      %p142 = por %p140, %p141
      %p143 = scmp.ne.s32.totalorder %s134, %s135
      %p144 = scmp.eq.s32.totalorder %s26, 0
      %p145 = por %p143, %p144
      %p146 = scmp.ne.s32.totalorder %s134, %s135
      %p147 = scmp.eq.s32.totalorder %s27, 3
      %p148 = por %p146, %p147
      %p150 = scmp.ne.s32.totalorder %s135, %s149
      %p151 = scmp.eq.s32.totalorder %s27, 0
      %p152 = por %p150, %p151
      %s154 = sadd.s32 %s153, 1
      %p157 = scmp.eq.s32.totalorder %s21, 3
      %p158 = scmp.ne.s32.totalorder %s153, %s155
      %p159 = scmp.eq.s32.totalorder %s21, 0
      %p160 = por %p158, %p159
      %p161 = scmp.ne.s32.totalorder %s153, %s155
      %p162 = scmp.eq.s32.totalorder %s26, 3
      %p163 = por %p161, %p162
      %p164 = scmp.ne.s32.totalorder %s155, %s156
      %p165 = scmp.eq.s32.totalorder %s26, 0
      %p166 = por %p164, %p165
      %p167 = scmp.ne.s32.totalorder %s155, %s156
      %p168 = scmp.eq.s32.totalorder %s27, 3
      %p169 = por %p167, %p168
      %p171 = scmp.ne.s32.totalorder %s156, %s170
      %p172 = scmp.eq.s32.totalorder %s27, 0
      %p173 = por %p171, %p172
      %s175 = sadd.s32 %s174, 1
      %p178 = scmp.eq.s32.totalorder %s21, 3
      %p179 = scmp.ne.s32.totalorder %s174, %s176
      %p180 = scmp.eq.s32.totalorder %s21, 0
      %p181 = por %p179, %p180
      %p182 = scmp.ne.s32.totalorder %s174, %s176
      %p183 = scmp.eq.s32.totalorder %s26, 3
      %p184 = por %p182, %p183
      %p185 = scmp.ne.s32.totalorder %s176, %s177
      %p186 = scmp.eq.s32.totalorder %s26, 0
      %p187 = por %p185, %p186
      %p188 = scmp.ne.s32.totalorder %s176, %s177
      %p189 = scmp.eq.s32.totalorder %s27, 3
      %p190 = por %p188, %p189
      %p192 = scmp.ne.s32.totalorder %s177, %s191
      %p193 = scmp.eq.s32.totalorder %s27, 0
      %p194 = por %p192, %p193
      %s196 = sadd.s32 %s195, 1
      %p199 = scmp.eq.s32.totalorder %s21, 3
      %p200 = scmp.ne.s32.totalorder %s195, %s197
      %p201 = scmp.eq.s32.totalorder %s21, 0
      %p202 = por %p200, %p201
      %p203 = scmp.ne.s32.totalorder %s195, %s197
      %p204 = scmp.eq.s32.totalorder %s26, 3
      %p205 = por %p203, %p204
      %p206 = scmp.ne.s32.totalorder %s197, %s198
      %p207 = scmp.eq.s32.totalorder %s26, 0
      %p208 = por %p206, %p207
      %p209 = scmp.ne.s32.totalorder %s197, %s198
      %p210 = scmp.eq.s32.totalorder %s27, 3
      %p211 = por %p209, %p210
      %p213 = scmp.ne.s32.totalorder %s198, %s212
      %p214 = scmp.eq.s32.totalorder %s27, 0
      %p215 = por %p213, %p214
      %s217 = sadd.s32 %s216, 1
      %p220 = scmp.eq.s32.totalorder %s21, 3
      %p221 = scmp.ne.s32.totalorder %s216, %s218
      %p222 = scmp.eq.s32.totalorder %s21, 0
      %p223 = por %p221, %p222
      %p224 = scmp.ne.s32.totalorder %s216, %s218
      %p225 = scmp.eq.s32.totalorder %s26, 3
      %p226 = por %p224, %p225
      %p227 = scmp.ne.s32.totalorder %s218, %s219
      %p228 = scmp.eq.s32.totalorder %s26, 0
      %p229 = por %p227, %p228
      %p230 = scmp.ne.s32.totalorder %s218, %s219
      %p231 = scmp.eq.s32.totalorder %s27, 3
      %p232 = por %p230, %p231
      %p234 = scmp.ne.s32.totalorder %s219, %s233
      %p235 = scmp.eq.s32.totalorder %s27, 0
      %p236 = por %p234, %p235
      %s237 = ssub.s32 %s28, %s40
      %s238 = ssub.s32 %s29, %s36
      %s239 = sor.u32 %s237, %s238
      %p240 = scmp.eq.s32.totalorder %s239, 0
      %s242 = sadd.s32 %s241, 1
      %s243 = scalar_select %p240, %s241, %s242
      %p246 = pneg %p240
      %p247 = scmp.eq.s32.totalorder %s21, 3
      %p248 = por %p246, %p247
      %p249 = scmp.ne.s32.totalorder %s241, %s244
      %p250 = scmp.eq.s32.totalorder %s21, 0
      %p251 = por %p249, %p250
      %p252 = scmp.ne.s32.totalorder %s241, %s244
      %p253 = scmp.eq.s32.totalorder %s26, 3
      %p254 = por %p252, %p253
      %p255 = scmp.ne.s32.totalorder %s244, %s245
      %p256 = scmp.eq.s32.totalorder %s26, 0
      %p257 = por %p255, %p256
      %p258 = scmp.ne.s32.totalorder %s244, %s245
      %p259 = scmp.eq.s32.totalorder %s27, 3
      %p260 = por %p258, %p259
      %p262 = scmp.ne.s32.totalorder %s245, %s261
      %p263 = scmp.eq.s32.totalorder %s27, 0
      %p264 = por %p262, %p263
      %p265 = scmp.le.s32.totalorder 1, %s21
      %p266 = scmp.lt.s32.totalorder %s21, 5
      %p267 = pnand %p265, %p266
      %p268 = pneg %p267
      // Predicated region
      $region9: #{mamba2_forward.1} parent=5 // pred_check
        _
      $region10: #{mamba2_forward.1} parent=5 // pred_check_branch
        %270 = sbr.rel (%p267) target = $region12
      $region11: #{mamba2_forward.1} parent=5 // pred_region
        %s271 = ssub.s32 %s21, 1
        // Predicated region
        $region13: #{mamba2_forward.1} parent=11 // pred_check
          %p272 = pneg %p82
        $region14: #{mamba2_forward.1} parent=11 // pred_check_branch
          %274 = sbr.rel (%p272) target = $region16
        $region15: #{mamba2_forward.1} parent=11 // pred_region
          %s276 = ssub.s32 7168, 7168
          %277 = vsyncadd [#allocation5], %s276
          %s278 = sshll.u32 [#allocation4], 4
          %s279 = int_to_ptr.vmem [resolvable:$true] %s278
          %284 = dma.hbm_to_vmem [thread:$0]  %s1, 7168, %s279, [#allocation5], 448, 448, 28
        $region16: #{mamba2_forward.1} parent=11 // pred_fallthru
          _
        // Predicated region
        $region17: #{mamba2_forward.1} parent=11 // pred_check
          %p285 = pneg %p103
        $region18: #{mamba2_forward.1} parent=11 // pred_check_branch
          %287 = sbr.rel (%p285) target = $region20
        $region19: #{mamba2_forward.1} parent=11 // pred_region
          _
        $region20: #{mamba2_forward.1} parent=11 // pred_fallthru
          _
        // Predicated region
        $region21: #{mamba2_forward.1} parent=11 // pred_check
          %p288 = pneg %p124
        $region22: #{mamba2_forward.1} parent=11 // pred_check_branch
          %290 = sbr.rel (%p288) target = $region24
        $region23: #{mamba2_forward.1} parent=11 // pred_region
          _
        $region24: #{mamba2_forward.1} parent=11 // pred_fallthru
          _
        // Predicated region
        $region25: #{mamba2_forward.1} parent=11 // pred_check
          %p291 = pneg %p145
        $region26: #{mamba2_forward.1} parent=11 // pred_check_branch
          %293 = sbr.rel (%p291) target = $region28
        $region27: #{mamba2_forward.1} parent=11 // pred_region
          _
        $region28: #{mamba2_forward.1} parent=11 // pred_fallthru
          _
        // Predicated region
        $region29: #{mamba2_forward.1} parent=11 // pred_check
          %p294 = pneg %p166
        $region30: #{mamba2_forward.1} parent=11 // pred_check_branch
          %296 = sbr.rel (%p294) target = $region32
        $region31: #{mamba2_forward.1} parent=11 // pred_region
          _
        $region32: #{mamba2_forward.1} parent=11 // pred_fallthru
          _
        // Predicated region
        $region33: #{mamba2_forward.1} parent=11 // pred_check
          %p297 = pneg %p187
        $region34: #{mamba2_forward.1} parent=11 // pred_check_branch
          %299 = sbr.rel (%p297) target = $region36
        $region35: #{mamba2_forward.1} parent=11 // pred_region
          %s301 = ssub.s32 16, 16
          %302 = vsyncadd [#allocation7], %s301
          %s304 = sshll.u32 %s6, 4
          %s305 = int_to_ptr.vmem [resolvable:$true] %s304
          %307 = dma.vmem_to_smem %s305, 16, [#allocation8], [#allocation7]
        $region36: #{mamba2_forward.1} parent=11 // pred_fallthru
          _
        // Predicated region
        $region37: #{mamba2_forward.1} parent=11 // pred_check
          %p308 = pneg %p208
        $region38: #{mamba2_forward.1} parent=11 // pred_check_branch
          %310 = sbr.rel (%p308) target = $region40
        $region39: #{mamba2_forward.1} parent=11 // pred_region
          _
        $region40: #{mamba2_forward.1} parent=11 // pred_fallthru
          _
        // Predicated region
        $region41: #{mamba2_forward.1} parent=11 // pred_check
          %p311 = pneg %p229
        $region42: #{mamba2_forward.1} parent=11 // pred_check_branch
          %313 = sbr.rel (%p311) target = $region44
        $region43: #{mamba2_forward.1} parent=11 // pred_region
          %s315 = ssub.s32 2048, 2048
          %316 = vsyncadd [#allocation10], %s315
          %s317 = sshll.u32 [#allocation9], 4
          %s318 = int_to_ptr.vmem [resolvable:$true] %s317
          %323 = dma.hbm_to_vmem [thread:$0]  %s8, 2048, %s318, [#allocation10], 64, 64, 4
        $region44: #{mamba2_forward.1} parent=11 // pred_fallthru
          _
      $region12: #{mamba2_forward.1} parent=5 // pred_fallthru
        _
      %p324 = scmp.lt.s32.totalorder %s21, 4
      // Predicated region
      $region45: #{mamba2_forward.1} parent=5 // pred_check
        %p325 = pneg %p324
      $region46: #{mamba2_forward.1} parent=5 // pred_check_branch
        %327 = sbr.rel (%p325) target = $region48
      $region47: #{mamba2_forward.1} parent=5 // pred_region
        // Predicated region
        $region49: #{mamba2_forward.1} parent=47 // pred_check
          %p328 = pneg %p55
        $region50: #{mamba2_forward.1} parent=47 // pred_check_branch
          %330 = sbr.rel (%p328) target = $region52
        $region51: #{mamba2_forward.1} parent=47 // pred_region
          %s331 = smul.u32 2, %s29
          %p332 = scmp.lt.s32.totalorder %s28, 1
          %s333 = scalar_select %p332, %s28, 1
          %p334 = scmp.lt.s32.totalorder %s331, 3
          %s335 = scalar_select %p334, %s331, 3
          %s336 = smul.addr %s333, 4
          %s337 = sadd.s32 %s335, %s336
          %s338 = smul.addr %s337, 4
          %s339 = scalar_lea.vmem %s0, %s338
          %s340 = smul.u32 2, %s29
        $region52: #{mamba2_forward.1} parent=47 // pred_fallthru
          _
      $region48: #{mamba2_forward.1} parent=5 // pred_fallthru
        _
      %p341 = scmp.le.s32.totalorder 1, %s21
      %p342 = scmp.lt.s32.totalorder %s21, 5
      %p343 = pnand %p341, %p342
      %p344 = pneg %p343
      // Predicated region
      $region53: #{mamba2_forward.1} parent=5 // pred_check
        _
      $region54: #{mamba2_forward.1} parent=5 // pred_check_branch
        %346 = sbr.rel (%p343) target = $region56
      $region55: #{mamba2_forward.1} parent=5 // pred_region
        %s347 = ssub.s32 %s21, 1
        // Predicated region
        $region57: #{mamba2_forward.1} parent=55 // pred_check
          %p348 = pneg %p82
        $region58: #{mamba2_forward.1} parent=55 // pred_check_branch
          %350 = sbr.rel (%p348) target = $region60
        $region59: #{mamba2_forward.1} parent=55 // pred_region
          %351 = dma.done [#allocation5], 7168
        $region60: #{mamba2_forward.1} parent=55 // pred_fallthru
          _
        // Predicated region
        $region61: #{mamba2_forward.1} parent=55 // pred_check
          %p352 = pneg %p187
        $region62: #{mamba2_forward.1} parent=55 // pred_check_branch
          %354 = sbr.rel (%p352) target = $region64
        $region63: #{mamba2_forward.1} parent=55 // pred_region
          %355 = dma.done [#allocation7], 16
        $region64: #{mamba2_forward.1} parent=55 // pred_fallthru
          _
        // Predicated region
        $region65: #{mamba2_forward.1} parent=55 // pred_check
          %p356 = pneg %p229
        $region66: #{mamba2_forward.1} parent=55 // pred_check_branch
          %358 = sbr.rel (%p356) target = $region68
        $region67: #{mamba2_forward.1} parent=55 // pred_region
          %359 = dma.done [#allocation10], 2048
        $region68: #{mamba2_forward.1} parent=55 // pred_fallthru
          _
        %360 = sfence
        %s361 = smul.u32 2, %s31
        %p362 = scmp.lt.s32.totalorder %s30, 1
        %s363 = scalar_select %p362, %s30, 1
        %p364 = scmp.lt.s32.totalorder %s361, 3
        %s365 = scalar_select %p364, %s361, 3
        %s366 = smul.addr %s363, 4
        %s367 = sadd.s32 %s365, %s366
        %s368 = smul.addr %s367, 4
        %s369 = scalar_lea.vmem %s0, %s368
        %p370 = pneg %p61
        %p371 = pneg %p58
        %p372 = pneg %p82
        %p373 = pneg %p79
        %p374 = pneg %p103
        %p375 = pneg %p100
        %p376 = pneg %p124
        %p377 = pneg %p121
        %p378 = pneg %p145
        %p379 = pneg %p142
        %p380 = pneg %p166
        %p381 = pneg %p163
        %p382 = pneg %p187
        %p383 = pneg %p184
        %p384 = pneg %p208
        %p385 = pneg %p205
        %p386 = pneg %p229
        %p387 = pneg %p226
        %p388 = pneg %p257
        %p389 = pneg %p254
        %s390 = sand.u32 %s244, 1
        %s391 = scalar_lea.sflag [#allocation6], %s390
        %s392 = sand.u32 %s244, 1
        %s393 = smul.addr %s392, 16
        %s394 = scalar_lea.vmem [#allocation11], %s393
        %s395 = smul.u32 2, %s31
        %p396 = scmp.lt.s32.totalorder %s30, 1
        %s397 = scalar_select %p396, %s30, 1
        %p398 = scmp.lt.s32.totalorder %s395, 3
        %s399 = scalar_select %p398, %s395, 3
        %s400 = smul.addr %s397, 4
        %s401 = sadd.s32 %s399, %s400
        %s402 = smul.addr %s401, 4
        %s403 = scalar_lea.vmem %s0, %s402
        %s404 = smul.u32 2, %s31
        %s405 = smul.u32 2, %s31
        %p407 = scmp.eq.s32.totalorder %s31, 0
        // Predicated region
        $region69: #{mamba2_forward.1} parent=55 // pred_check
          %p408 = pneg %p407
        $region70: #{mamba2_forward.1} parent=55 // pred_check_branch
          %410 = sbr.rel (%p408) target = $region72
        $region71: #{mamba2_forward.1} parent=55 // pred_region
          %411 = vst [vmem:[#allocation2] sm:$0xff] 0.0
          %412 = vst [vmem:[#allocation2 + $0x8] sm:$0xff] 0.0
          %413 = vst [vmem:[#allocation2 + $0x10] sm:$0xff] 0.0
          %414 = vst [vmem:[#allocation2 + $0x18] sm:$0xff] 0.0
          %415 = vst [vmem:[#allocation2 + $0x20] sm:$0xff] 0.0
          %416 = vst [vmem:[#allocation2 + $0x28] sm:$0xff] 0.0
          %417 = vst [vmem:[#allocation2 + $0x30] sm:$0xff] 0.0
          %418 = vst [vmem:[#allocation2 + $0x38] sm:$0xff] 0.0
          %419 = vst [vmem:[#allocation2 + $0x40] sm:$0xff] 0.0
          %420 = vst [vmem:[#allocation2 + $0x48] sm:$0xff] 0.0
          %421 = vst [vmem:[#allocation2 + $0x50] sm:$0xff] 0.0
          %422 = vst [vmem:[#allocation2 + $0x58] sm:$0xff] 0.0
          %423 = vst [vmem:[#allocation2 + $0x60] sm:$0xff] 0.0
          %424 = vst [vmem:[#allocation2 + $0x68] sm:$0xff] 0.0
          %425 = vst [vmem:[#allocation2 + $0x70] sm:$0xff] 0.0
          %426 = vst [vmem:[#allocation2 + $0x78] sm:$0xff] 0.0
          %427 = vst [vmem:[#allocation2 + $0x80] sm:$0xff] 0.0
          %428 = vst [vmem:[#allocation2 + $0x88] sm:$0xff] 0.0
          %429 = vst [vmem:[#allocation2 + $0x90] sm:$0xff] 0.0
          %430 = vst [vmem:[#allocation2 + $0x98] sm:$0xff] 0.0
          %431 = vst [vmem:[#allocation2 + $0xa0] sm:$0xff] 0.0
          %432 = vst [vmem:[#allocation2 + $0xa8] sm:$0xff] 0.0
          %433 = vst [vmem:[#allocation2 + $0xb0] sm:$0xff] 0.0
          %434 = vst [vmem:[#allocation2 + $0xb8] sm:$0xff] 0.0
          %435 = vst [vmem:[#allocation2 + $0xc0] sm:$0xff] 0.0
          %436 = vst [vmem:[#allocation2 + $0xc8] sm:$0xff] 0.0
          %437 = vst [vmem:[#allocation2 + $0xd0] sm:$0xff] 0.0
          %438 = vst [vmem:[#allocation2 + $0xd8] sm:$0xff] 0.0
          %439 = vst [vmem:[#allocation2 + $0xe0] sm:$0xff] 0.0
          %440 = vst [vmem:[#allocation2 + $0xe8] sm:$0xff] 0.0
          %441 = vst [vmem:[#allocation2 + $0xf0] sm:$0xff] 0.0
          %442 = vst [vmem:[#allocation2 + $0xf8] sm:$0xff] 0.0
          %443 = vst [vmem:[#allocation3] sm:$0xff] 0.0
          %444 = vst [vmem:[#allocation3 + $0x8] sm:$0xff] 0.0
          %445 = vst [vmem:[#allocation3 + $0x10] sm:$0xff] 0.0
          %446 = vst [vmem:[#allocation3 + $0x18] sm:$0xff] 0.0
        $region72: #{mamba2_forward.1} parent=55 // pred_fallthru
          _
        %v447 = vld [vmem:[%s403] sm:$0xf]
        %v448 = vld [vmem:[%s403 + $0x4] sm:$0xf]
        %v449 = vld [vmem:[#allocation4] sm:$0xff]
        %v450 = vld [vmem:[#allocation4 + $0x8] sm:$0xff]
        %v451 = vld [vmem:[#allocation4 + $0x10] sm:$0xff]
        %v452 = vld [vmem:[#allocation4 + $0x18] sm:$0xf]
        %v453 = vld [vmem:[#allocation4 + $0x1c] sm:$0xff]
        %v454 = vld [vmem:[#allocation4 + $0x24] sm:$0xff]
        %v455 = vld [vmem:[#allocation4 + $0x2c] sm:$0xff]
        %v456 = vld [vmem:[#allocation4 + $0x34] sm:$0xf]
        %v457 = vld [vmem:[#allocation4 + $0x38] sm:$0xff]
        %v458 = vld [vmem:[#allocation4 + $0x40] sm:$0xff]
        %v459 = vld [vmem:[#allocation4 + $0x48] sm:$0xff]
        %v460 = vld [vmem:[#allocation4 + $0x50] sm:$0xf]
        %v461 = vld [vmem:[#allocation4 + $0x54] sm:$0xff]
        %v462 = vld [vmem:[#allocation4 + $0x5c] sm:$0xff]
        %v463 = vld [vmem:[#allocation4 + $0x64] sm:$0xff]
        %v464 = vld [vmem:[#allocation4 + $0x6c] sm:$0xf]
        %v465 = vld [vmem:[#allocation4 + $0x70] sm:$0xff]
        %v466 = vld [vmem:[#allocation4 + $0x78] sm:$0xff]
        %v467 = vld [vmem:[#allocation4 + $0x80] sm:$0xff]
        %v468 = vld [vmem:[#allocation4 + $0x88] sm:$0xf]
        %v469 = vld [vmem:[#allocation4 + $0x8c] sm:$0xff]
        %v470 = vld [vmem:[#allocation4 + $0x94] sm:$0xff]
        %v471 = vld [vmem:[#allocation4 + $0x9c] sm:$0xff]
        %v472 = vld [vmem:[#allocation4 + $0xa4] sm:$0xf]
        %v473 = vld [vmem:[#allocation4 + $0xa8] sm:$0xff]
        %v474 = vld [vmem:[#allocation4 + $0xb0] sm:$0xff]
        %v475 = vld [vmem:[#allocation4 + $0xb8] sm:$0xff]
        %v476 = vld [vmem:[#allocation4 + $0xc0] sm:$0xf]
        %v477 = vld [vmem:[#allocation4 + $0xc4] sm:$0xff]
        %v478 = vld [vmem:[#allocation4 + $0xcc] sm:$0xff]
        %v479 = vld [vmem:[#allocation4 + $0xd4] sm:$0xff]
        %v480 = vld [vmem:[#allocation4 + $0xdc] sm:$0xf]
        %v481 = vld [vmem:[#allocation4 + $0xe0] sm:$0xff]
        %v482 = vld [vmem:[#allocation4 + $0xe8] sm:$0xff]
        %v483 = vld [vmem:[#allocation4 + $0xf0] sm:$0xff]
        %v484 = vld [vmem:[#allocation4 + $0xf8] sm:$0xf]
        %v485 = vld [vmem:[#allocation4 + $0xfc] sm:$0xff]
        %v486 = vld [vmem:[#allocation4 + $0x104] sm:$0xff]
        %v487 = vld [vmem:[#allocation4 + $0x10c] sm:$0xff]
        %v488 = vld [vmem:[#allocation4 + $0x114] sm:$0xf]
        %v489 = vld [vmem:[#allocation4 + $0x118] sm:$0xff]
        %v490 = vld [vmem:[#allocation4 + $0x120] sm:$0xff]
        %v491 = vld [vmem:[#allocation4 + $0x128] sm:$0xff]
        %v492 = vld [vmem:[#allocation4 + $0x130] sm:$0xf]
        %v493 = vld [vmem:[#allocation4 + $0x134] sm:$0xff]
        %v494 = vld [vmem:[#allocation4 + $0x13c] sm:$0xff]
        %v495 = vld [vmem:[#allocation4 + $0x144] sm:$0xff]
        %v496 = vld [vmem:[#allocation4 + $0x14c] sm:$0xf]
        %v497 = vld [vmem:[#allocation4 + $0x150] sm:$0xff]
        %v498 = vld [vmem:[#allocation4 + $0x158] sm:$0xff]
        %v499 = vld [vmem:[#allocation4 + $0x160] sm:$0xff]
        %v500 = vld [vmem:[#allocation4 + $0x168] sm:$0xf]
        %v501 = vld [vmem:[#allocation4 + $0x16c] sm:$0xff]
        %v502 = vld [vmem:[#allocation4 + $0x174] sm:$0xff]
        %v503 = vld [vmem:[#allocation4 + $0x17c] sm:$0xff]
        %v504 = vld [vmem:[#allocation4 + $0x184] sm:$0xf]
        %v505 = vld [vmem:[#allocation4 + $0x188] sm:$0xff]
        %v506 = vld [vmem:[#allocation4 + $0x190] sm:$0xff]
        %v507 = vld [vmem:[#allocation4 + $0x198] sm:$0xff]
        %v508 = vld [vmem:[#allocation4 + $0x1a0] sm:$0xf]
        %v509 = vld [vmem:[#allocation4 + $0x1a4] sm:$0xff]
        %v510 = vld [vmem:[#allocation4 + $0x1ac] sm:$0xff]
        %v511 = vld [vmem:[#allocation4 + $0x1b4] sm:$0xff]
        %v512 = vld [vmem:[#allocation4 + $0x1bc] sm:$0xf]
        %v515 = vunpack.c.l.b16 %v447
        %v516 = vunpack.c.l.b16 %v448
        %v517 = vpack.c.b16 %v516, %v515
        %v583 = vunpack.c.l.b16 %v449
        %v584 = vunpack.c.h.b16 %v449
        %v585 = vunpack.c.l.b16 %v450
        %v586 = vunpack.c.h.b16 %v450
        %v587 = vunpack.c.l.b16 %v451
        %v588 = vunpack.c.h.b16 %v451
        %v589 = vunpack.c.l.b16 %v452
        %v590 = vunpack.c.l.b16 %v453
        %v591 = vunpack.c.h.b16 %v453
        %v592 = vunpack.c.l.b16 %v454
        %v593 = vunpack.c.h.b16 %v454
        %v594 = vunpack.c.l.b16 %v455
        %v595 = vunpack.c.h.b16 %v455
        %v596 = vunpack.c.l.b16 %v456
        %v597 = vunpack.c.l.b16 %v457
        %v598 = vunpack.c.h.b16 %v457
        %v599 = vunpack.c.l.b16 %v458
        %v600 = vunpack.c.h.b16 %v458
        %v601 = vunpack.c.l.b16 %v459
        %v602 = vunpack.c.h.b16 %v459
        %v603 = vunpack.c.l.b16 %v460
        %v604 = vunpack.c.l.b16 %v461
        %v605 = vunpack.c.h.b16 %v461
        %v606 = vunpack.c.l.b16 %v462
        %v607 = vunpack.c.h.b16 %v462
        %v608 = vunpack.c.l.b16 %v463
        %v609 = vunpack.c.h.b16 %v463
        %v610 = vunpack.c.l.b16 %v464
        %v611 = vunpack.c.l.b16 %v465
        %v612 = vunpack.c.h.b16 %v465
        %v613 = vunpack.c.l.b16 %v466
        %v614 = vunpack.c.h.b16 %v466
        %v615 = vunpack.c.l.b16 %v467
        %v616 = vunpack.c.h.b16 %v467
        %v617 = vunpack.c.l.b16 %v468
        %v618 = vunpack.c.l.b16 %v469
        %v619 = vunpack.c.h.b16 %v469
        %v620 = vunpack.c.l.b16 %v470
        %v621 = vunpack.c.h.b16 %v470
        %v622 = vunpack.c.l.b16 %v471
        %v623 = vunpack.c.h.b16 %v471
        %v624 = vunpack.c.l.b16 %v472
        %v625 = vunpack.c.l.b16 %v473
        %v626 = vunpack.c.h.b16 %v473
        %v627 = vunpack.c.l.b16 %v474
        %v628 = vunpack.c.h.b16 %v474
        %v629 = vunpack.c.l.b16 %v475
        %v630 = vunpack.c.h.b16 %v475
        %v631 = vunpack.c.l.b16 %v476
        %v632 = vunpack.c.l.b16 %v477
        %v633 = vunpack.c.h.b16 %v477
        %v634 = vunpack.c.l.b16 %v478
        %v635 = vunpack.c.h.b16 %v478
        %v636 = vunpack.c.l.b16 %v479
        %v637 = vunpack.c.h.b16 %v479
        %v638 = vunpack.c.l.b16 %v480
        %v639 = vunpack.c.l.b16 %v481
        %v640 = vunpack.c.h.b16 %v481
        %v641 = vunpack.c.l.b16 %v482
        %v642 = vunpack.c.h.b16 %v482
        %v643 = vunpack.c.l.b16 %v483
        %v644 = vunpack.c.h.b16 %v483
        %v645 = vunpack.c.l.b16 %v484
        %v646 = vunpack.c.l.b16 %v485
        %v647 = vunpack.c.h.b16 %v485
        %v648 = vunpack.c.l.b16 %v486
        %v649 = vunpack.c.h.b16 %v486
        %v650 = vunpack.c.l.b16 %v487
        %v651 = vunpack.c.h.b16 %v487
        %v652 = vunpack.c.l.b16 %v488
        %v653 = vunpack.c.l.b16 %v489
        %v654 = vunpack.c.h.b16 %v489
        %v655 = vunpack.c.l.b16 %v490
        %v656 = vunpack.c.h.b16 %v490
        %v657 = vunpack.c.l.b16 %v491
        %v658 = vunpack.c.h.b16 %v491
        %v659 = vunpack.c.l.b16 %v492
        %v660 = vunpack.c.l.b16 %v493
        %v661 = vunpack.c.h.b16 %v493
        %v662 = vunpack.c.l.b16 %v494
        %v663 = vunpack.c.h.b16 %v494
        %v664 = vunpack.c.l.b16 %v495
        %v665 = vunpack.c.h.b16 %v495
        %v666 = vunpack.c.l.b16 %v496
        %v667 = vunpack.c.l.b16 %v497
        %v668 = vunpack.c.h.b16 %v497
        %v669 = vunpack.c.l.b16 %v498
        %v670 = vunpack.c.h.b16 %v498
        %v671 = vunpack.c.l.b16 %v499
        %v672 = vunpack.c.h.b16 %v499
        %v673 = vunpack.c.l.b16 %v500
        %v674 = vunpack.c.l.b16 %v501
        %v675 = vunpack.c.h.b16 %v501
        %v676 = vunpack.c.l.b16 %v502
        %v677 = vunpack.c.h.b16 %v502
        %v678 = vunpack.c.l.b16 %v503
        %v679 = vunpack.c.h.b16 %v503
        %v680 = vunpack.c.l.b16 %v504
        %v681 = vunpack.c.l.b16 %v505
        %v682 = vunpack.c.h.b16 %v505
        %v683 = vunpack.c.l.b16 %v506
        %v684 = vunpack.c.h.b16 %v506
        %v685 = vunpack.c.l.b16 %v507
        %v686 = vunpack.c.h.b16 %v507
        %v687 = vunpack.c.l.b16 %v508
        %v688 = vunpack.c.l.b16 %v509
        %v689 = vunpack.c.h.b16 %v509
        %v690 = vunpack.c.l.b16 %v510
        %v691 = vunpack.c.h.b16 %v510
        %v692 = vunpack.c.l.b16 %v511
        %v693 = vunpack.c.h.b16 %v511
        %v694 = vunpack.c.l.b16 %v512
        %v695 = vpack.c.b16 %v590, %v583
        %v696 = vpack.c.b16 %v591, %v584
        %v697 = vpack.c.b16 %v592, %v585
        %v698 = vpack.c.b16 %v593, %v586
        %v699 = vpack.c.b16 %v594, %v587
        %v700 = vpack.c.b16 %v595, %v588
        %v701 = vpack.c.b16 %v596, %v589
        %v702 = vpack.c.b16 %v604, %v597
        %v703 = vpack.c.b16 %v605, %v598
        %v704 = vpack.c.b16 %v606, %v599
        %v705 = vpack.c.b16 %v607, %v600
        %v706 = vpack.c.b16 %v608, %v601
        %v707 = vpack.c.b16 %v609, %v602
        %v708 = vpack.c.b16 %v610, %v603
        %v709 = vpack.c.b16 %v618, %v611
        %v710 = vpack.c.b16 %v619, %v612
        %v711 = vpack.c.b16 %v620, %v613
        %v712 = vpack.c.b16 %v621, %v614
        %v713 = vpack.c.b16 %v622, %v615
        %v714 = vpack.c.b16 %v623, %v616
        %v715 = vpack.c.b16 %v624, %v617
        %v716 = vpack.c.b16 %v632, %v625
        %v717 = vpack.c.b16 %v633, %v626
        %v718 = vpack.c.b16 %v634, %v627
        %v719 = vpack.c.b16 %v635, %v628
        %v720 = vpack.c.b16 %v636, %v629
        %v721 = vpack.c.b16 %v637, %v630
        %v722 = vpack.c.b16 %v638, %v631
        %v723 = vpack.c.b16 %v646, %v639
        %v724 = vpack.c.b16 %v647, %v640
        %v725 = vpack.c.b16 %v648, %v641
        %v726 = vpack.c.b16 %v649, %v642
        %v727 = vpack.c.b16 %v650, %v643
        %v728 = vpack.c.b16 %v651, %v644
        %v729 = vpack.c.b16 %v652, %v645
        %v730 = vpack.c.b16 %v660, %v653
        %v731 = vpack.c.b16 %v661, %v654
        %v732 = vpack.c.b16 %v662, %v655
        %v733 = vpack.c.b16 %v663, %v656
        %v734 = vpack.c.b16 %v664, %v657
        %v735 = vpack.c.b16 %v665, %v658
        %v736 = vpack.c.b16 %v666, %v659
        %v737 = vpack.c.b16 %v674, %v667
        %v738 = vpack.c.b16 %v675, %v668
        %v739 = vpack.c.b16 %v676, %v669
        %v740 = vpack.c.b16 %v677, %v670
        %v741 = vpack.c.b16 %v678, %v671
        %v742 = vpack.c.b16 %v679, %v672
        %v743 = vpack.c.b16 %v680, %v673
        %v744 = vpack.c.b16 %v688, %v681
        %v745 = vpack.c.b16 %v689, %v682
        %v746 = vpack.c.b16 %v690, %v683
        %v747 = vpack.c.b16 %v691, %v684
        %v748 = vpack.c.b16 %v692, %v685
        %v749 = vpack.c.b16 %v693, %v686
        %v750 = vpack.c.b16 %v694, %v687
        %807 = vmatprep.subr.bf16.mxu0 %v696
        %808 = vmatpush1.bf16.msra.mxu0 %v695
        %809 = vmatprep.subr.bf16.mxu0 %v703
        %810 = vmatpush1.bf16.msra.mxu0 %v702
        %811 = vmatprep.subr.bf16.mxu0 %v710
        %812 = vmatpush1.bf16.msra.mxu0 %v709
        %813 = vmatprep.subr.bf16.mxu0 %v717
        %814 = vmatpush1.bf16.msra.mxu0 %v716
        %815 = vmatprep.subr.bf16.mxu0 %v724
        %816 = vmatpush1.bf16.msra.mxu0 %v723
        %817 = vmatprep.subr.bf16.mxu0 %v731
        %818 = vmatpush1.bf16.msra.mxu0 %v730
        %819 = vmatprep.subr.bf16.mxu0 %v738
        %820 = vmatpush1.bf16.msra.mxu0 %v737
        %821 = vmatprep.subr.bf16.mxu0 %v745
        %822 = vmatpush1.bf16.msra.mxu0 %v744
        %823 = vmatprep.subr.bf16.mxu0 0
        %824 = vmatpush1.bf16.msra.mxu0 0
        %825 = vmatprep.subr.bf16.mxu0 0
        %826 = vmatpush1.bf16.msra.mxu0 0
        %827 = vmatprep.subr.bf16.mxu0 0
        %828 = vmatpush1.bf16.msra.mxu0 0
        %829 = vmatprep.subr.bf16.mxu0 0
        %830 = vmatpush1.bf16.msra.mxu0 0
        %831 = vmatprep.subr.bf16.mxu0 0
        %832 = vmatpush1.bf16.msra.mxu0 0
        %833 = vmatprep.subr.bf16.mxu0 0
        %834 = vmatpush1.bf16.msra.mxu0 0
        %835 = vmatprep.subr.bf16.mxu0 0
        %836 = vmatpush1.bf16.msra.mxu0 0
        %837 = vmatprep.subr.bf16.mxu0 0
        %838 = vmatpush1.bf16.msra.mxu0 0
        %839 = vmatprep.mubr.bf16.mxu0 0
        %840 = vmatmul.mubr.bf16.gmra.mrb[0].mxu0 %v517
        %v841 = vpop.f32.mrb[0].mxu0
        %v842 = vadd.f32 0.0, %v841
        %v843 = vpop.f32.mrb[0].mxu0
        %v844 = vadd.f32 0.0, %v843
        %v845 = vpop.f32.mrb[0].mxu0
        %v846 = vadd.f32 0.0, %v845
        %v847 = vpop.f32.mrb[0].mxu0
        %v848 = vadd.f32 0.0, %v847
        %849 = vdwg.mxu0
        %850 = vmatprep.subr.bf16.mxu0 %v698
        %851 = vmatpush1.bf16.msra.mxu0 %v697
        %852 = vmatprep.subr.bf16.mxu0 %v705
        %853 = vmatpush1.bf16.msra.mxu0 %v704
        %854 = vmatprep.subr.bf16.mxu0 %v712
        %855 = vmatpush1.bf16.msra.mxu0 %v711
        %856 = vmatprep.subr.bf16.mxu0 %v719
        %857 = vmatpush1.bf16.msra.mxu0 %v718
        %858 = vmatprep.subr.bf16.mxu0 %v726
        %859 = vmatpush1.bf16.msra.mxu0 %v725
        %860 = vmatprep.subr.bf16.mxu0 %v733
        %861 = vmatpush1.bf16.msra.mxu0 %v732
        %862 = vmatprep.subr.bf16.mxu0 %v740
        %863 = vmatpush1.bf16.msra.mxu0 %v739
        %864 = vmatprep.subr.bf16.mxu0 %v747
        %865 = vmatpush1.bf16.msra.mxu0 %v746
        %866 = vmatprep.subr.bf16.mxu0 0
        %867 = vmatpush1.bf16.msra.mxu0 0
        %868 = vmatprep.subr.bf16.mxu0 0
        %869 = vmatpush1.bf16.msra.mxu0 0
        %870 = vmatprep.subr.bf16.mxu0 0
        %871 = vmatpush1.bf16.msra.mxu0 0
        %872 = vmatprep.subr.bf16.mxu0 0
        %873 = vmatpush1.bf16.msra.mxu0 0
        %874 = vmatprep.subr.bf16.mxu0 0
        %875 = vmatpush1.bf16.msra.mxu0 0
        %876 = vmatprep.subr.bf16.mxu0 0
        %877 = vmatpush1.bf16.msra.mxu0 0
        %878 = vmatprep.subr.bf16.mxu0 0
        %879 = vmatpush1.bf16.msra.mxu0 0
        %880 = vmatprep.subr.bf16.mxu0 0
        %881 = vmatpush1.bf16.msra.mxu0 0
        %882 = vmatprep.mubr.bf16.mxu0 0
        %883 = vmatmul.mubr.bf16.gmra.mrb[0].mxu0 %v517
        %v884 = vpop.f32.mrb[0].mxu0
        %v885 = vadd.f32 0.0, %v884
        %v886 = vpop.f32.mrb[0].mxu0
        %v887 = vadd.f32 0.0, %v886
        %v888 = vpop.f32.mrb[0].mxu0
        %v889 = vadd.f32 0.0, %v888
        %v890 = vpop.f32.mrb[0].mxu0
        %v891 = vadd.f32 0.0, %v890
        %892 = vdwg.mxu0
        %893 = vmatprep.subr.bf16.mxu0 %v700
        %894 = vmatpush1.bf16.msra.mxu0 %v699
        %895 = vmatprep.subr.bf16.mxu0 %v707
        %896 = vmatpush1.bf16.msra.mxu0 %v706
        %897 = vmatprep.subr.bf16.mxu0 %v714
        %898 = vmatpush1.bf16.msra.mxu0 %v713
        %899 = vmatprep.subr.bf16.mxu0 %v721
        %900 = vmatpush1.bf16.msra.mxu0 %v720
        %901 = vmatprep.subr.bf16.mxu0 %v728
        %902 = vmatpush1.bf16.msra.mxu0 %v727
        %903 = vmatprep.subr.bf16.mxu0 %v735
        %904 = vmatpush1.bf16.msra.mxu0 %v734
        %905 = vmatprep.subr.bf16.mxu0 %v742
        %906 = vmatpush1.bf16.msra.mxu0 %v741
        %907 = vmatprep.subr.bf16.mxu0 %v749
        %908 = vmatpush1.bf16.msra.mxu0 %v748
        %909 = vmatprep.subr.bf16.mxu0 0
        %910 = vmatpush1.bf16.msra.mxu0 0
        %911 = vmatprep.subr.bf16.mxu0 0
        %912 = vmatpush1.bf16.msra.mxu0 0
        %913 = vmatprep.subr.bf16.mxu0 0
        %914 = vmatpush1.bf16.msra.mxu0 0
        %915 = vmatprep.subr.bf16.mxu0 0
        %916 = vmatpush1.bf16.msra.mxu0 0
        %917 = vmatprep.subr.bf16.mxu0 0
        %918 = vmatpush1.bf16.msra.mxu0 0
        %919 = vmatprep.subr.bf16.mxu0 0
        %920 = vmatpush1.bf16.msra.mxu0 0
        %921 = vmatprep.subr.bf16.mxu0 0
        %922 = vmatpush1.bf16.msra.mxu0 0
        %923 = vmatprep.subr.bf16.mxu0 0
        %924 = vmatpush1.bf16.msra.mxu0 0
        %925 = vmatprep.mubr.bf16.mxu0 0
        %926 = vmatmul.mubr.bf16.gmra.mrb[0].mxu0 %v517
        %v927 = vpop.f32.mrb[0].mxu0
        %v928 = vadd.f32 0.0, %v927
        %v929 = vpop.f32.mrb[0].mxu0
        %v930 = vadd.f32 0.0, %v929
        %v931 = vpop.f32.mrb[0].mxu0
        %v932 = vadd.f32 0.0, %v931
        %v933 = vpop.f32.mrb[0].mxu0
        %v934 = vadd.f32 0.0, %v933
        %935 = vdwg.mxu0
        %936 = vmatprep.subr.bf16.mxu0 0
        %937 = vmatpush1.bf16.msra.mxu0 %v701
        %938 = vmatprep.subr.bf16.mxu0 0
        %939 = vmatpush1.bf16.msra.mxu0 %v708
        %940 = vmatprep.subr.bf16.mxu0 0
        %941 = vmatpush1.bf16.msra.mxu0 %v715
        %942 = vmatprep.subr.bf16.mxu0 0
        %943 = vmatpush1.bf16.msra.mxu0 %v722
        %944 = vmatprep.subr.bf16.mxu0 0
        %945 = vmatpush1.bf16.msra.mxu0 %v729
        %946 = vmatprep.subr.bf16.mxu0 0
        %947 = vmatpush1.bf16.msra.mxu0 %v736
        %948 = vmatprep.subr.bf16.mxu0 0
        %949 = vmatpush1.bf16.msra.mxu0 %v743
        %950 = vmatprep.subr.bf16.mxu0 0
        %951 = vmatpush1.bf16.msra.mxu0 %v750
        %952 = vmatprep.subr.bf16.mxu0 0
        %953 = vmatpush1.bf16.msra.mxu0 0
        %954 = vmatprep.subr.bf16.mxu0 0
        %955 = vmatpush1.bf16.msra.mxu0 0
        %956 = vmatprep.subr.bf16.mxu0 0
        %957 = vmatpush1.bf16.msra.mxu0 0
        %958 = vmatprep.subr.bf16.mxu0 0
        %959 = vmatpush1.bf16.msra.mxu0 0
        %960 = vmatprep.subr.bf16.mxu0 0
        %961 = vmatpush1.bf16.msra.mxu0 0
        %962 = vmatprep.subr.bf16.mxu0 0
        %963 = vmatpush1.bf16.msra.mxu0 0
        %964 = vmatprep.subr.bf16.mxu0 0
        %965 = vmatpush1.bf16.msra.mxu0 0
        %966 = vmatprep.subr.bf16.mxu0 0
        %967 = vmatpush1.bf16.msra.mxu0 0
        %968 = vmatprep.mubr.bf16.mxu0 0
        %969 = vmatmul.mubr.bf16.gmra.mrb[0].mxu0 %v517
        %v970 = vpop.f32.mrb[0].mxu0
        %v971 = vadd.f32 0.0, %v970
        %v972 = vpop.f32.mrb[0].mxu0
        %v973 = vpop.f32.mrb[0].mxu0
        %v974 = vadd.f32 0.0, %v973
        %v975 = vpop.f32.mrb[0].mxu0
        %976 = vdwg.mxu0
        %v977 = vld [vmem:[%s4] sm:$0x1]
        %v979 = vlaneseq
        %v980 = vshrl.u32 %v979, 7
        %v981 = vsub.s32 0, %v980
        %v982 = vrot.slane %v977, %v981
        %v984 = vadd.f32 %v971, %v982
        %v985 = vadd.f32 %v974, %v982
        %v986 = vmax.f32 %v984, 0.0
        %v987 = vmax.f32 %v985, 0.0
        %v988 = vand.u32 2147483647, %v984
        %v989 = vand.u32 2147483647, %v985
        %v990 = vsub.f32 0.0, %v988
        %v991 = vsub.f32 0.0, %v989
        %v992 = vmul.f32 %v990, 1.442695
        %v993 = vpow.pop %v992
        %v994 = vmul.f32 %v991, 1.442695
        %v995 = vpow.pop %v994
        %v996 = vadd.f32 %v993, 1.0
        %v997 = vadd.f32 %v995, 1.0
        %v998 = vlog2.pop %v996
        %v999 = vmul.f32 %v998, 0.6931472
        %v1000 = vlog2.pop %v997
        %v1001 = vmul.f32 %v1000, 0.6931472
        %v1002 = vadd.f32 %v986, %v999
        %v1003 = vadd.f32 %v987, %v1001
        %1004 = vst [vmem:[#allocation3 + $0x20] sm:$0xff] %v885
        %1005 = vst [vmem:[#allocation3 + $0x28] sm:$0xff] %v887
        %1006 = vst [vmem:[#allocation3 + $0x30] sm:$0xff] %v928
        %1007 = vst [vmem:[#allocation3 + $0x38] sm:$0xff] %v930
        %1008 = vst [vmem:[#allocation3 + $0x40] sm:$0xff] %v889
        %1009 = vst [vmem:[#allocation3 + $0x48] sm:$0xff] %v891
        %1010 = vst [vmem:[#allocation3 + $0x50] sm:$0xff] %v932
        %1011 = vst [vmem:[#allocation3 + $0x58] sm:$0xff] %v934
        %v1012 = vld [vmem:[%s3] sm:$0xf]
        %s1013 = scalar_lea.vmem %s2, 3
        %v1014 = vld [vmem:[%s1013] ss:$4 sm:$0xf]
        %v1016 = vlaneseq
        %v1017 = vshrl.u32 %v1016, 7
        %v1018 = vsub.s32 0, %v1017
        %v1019 = vrot.slane %v1014, %v1018
        %v1020 = vlaneseq
        %v1021 = vshrl.u32 %v1020, 7
        %v1022 = vsub.s32 1, %v1021
        %v1023 = vrot.slane %v1014, %v1022
        %v1024 = vlaneseq
        %v1025 = vshrl.u32 %v1024, 7
        %v1026 = vsub.s32 2, %v1025
        %v1027 = vrot.slane %v1014, %v1026
        %v1028 = vlaneseq
        %v1029 = vshrl.u32 %v1028, 7
        %v1030 = vsub.s32 3, %v1029
        %v1031 = vrot.slane %v1014, %v1030
        %v1036 = vmul.f32 %v1019, %v885
        %v1037 = vmul.f32 %v1023, %v887
        %v1038 = vmul.f32 %v1027, %v928
        %v1039 = vmul.f32 %v1031, %v930
        %v1040 = vmul.f32 %v1019, %v889
        %v1041 = vmul.f32 %v1023, %v891
        %v1042 = vmul.f32 %v1027, %v932
        %v1043 = vmul.f32 %v1031, %v934
        %v1045 = vlaneseq
        %v1046 = vshrl.u32 %v1045, 7
        %v1047 = vsub.s32 0, %v1046
        %v1048 = vrot.slane %v1012, %v1047
        %v1049 = vlaneseq
        %v1050 = vshrl.u32 %v1049, 7
        %v1051 = vsub.s32 1, %v1050
        %v1052 = vrot.slane %v1012, %v1051
        %v1053 = vlaneseq
        %v1054 = vshrl.u32 %v1053, 7
        %v1055 = vsub.s32 2, %v1054
        %v1056 = vrot.slane %v1012, %v1055
        %v1057 = vlaneseq
        %v1058 = vshrl.u32 %v1057, 7
        %v1059 = vsub.s32 3, %v1058
        %v1060 = vrot.slane %v1012, %v1059
        %v1065 = vadd.f32 %v1048, %v1036
        %v1066 = vadd.f32 %v1052, %v1037
        %v1067 = vadd.f32 %v1056, %v1038
        %v1068 = vadd.f32 %v1060, %v1039
        %v1069 = vadd.f32 %v1048, %v1040
        %v1070 = vadd.f32 %v1052, %v1041
        %v1071 = vadd.f32 %v1056, %v1042
        %v1072 = vadd.f32 %v1060, %v1043
        %v1073 = vld [vmem:[%s2] ss:$4 sm:$0xf]
        %v1074 = vld [vmem:[#allocation3] sm:$0xe0]
        %v1075 = vld [vmem:[#allocation3 + $0x8] sm:$0xe0]
        %v1076 = vld [vmem:[#allocation3 + $0x10] sm:$0xe0]
        %v1077 = vld [vmem:[#allocation3 + $0x18] sm:$0xe0]
        %v1078 = vld [vmem:[#allocation3 + $0x20] sm:$0xff]
        %v1079 = vld [vmem:[#allocation3 + $0x28] sm:$0xff]
        %v1080 = vld [vmem:[#allocation3 + $0x30] sm:$0xff]
        %v1081 = vld [vmem:[#allocation3 + $0x38] sm:$0xff]
        %v1082 = vld [vmem:[#allocation3 + $0x40] sm:$0x1f]
        %v1083 = vld [vmem:[#allocation3 + $0x48] sm:$0x1f]
        %v1084 = vld [vmem:[#allocation3 + $0x50] sm:$0x1f]
        %v1085 = vld [vmem:[#allocation3 + $0x58] sm:$0x1f]
        %v1087 = vlaneseq
        %v1088 = vshrl.u32 %v1087, 7
        %v1089 = vsub.s32 0, %v1088
        %v1090 = vrot.slane %v1073, %v1089
        %v1091 = vlaneseq
        %v1092 = vshrl.u32 %v1091, 7
        %v1093 = vsub.s32 1, %v1092
        %v1094 = vrot.slane %v1073, %v1093
        %v1095 = vlaneseq
        %v1096 = vshrl.u32 %v1095, 7
        %v1097 = vsub.s32 2, %v1096
        %v1098 = vrot.slane %v1073, %v1097
        %v1099 = vlaneseq
        %v1100 = vshrl.u32 %v1099, 7
        %v1101 = vsub.s32 3, %v1100
        %v1102 = vrot.slane %v1073, %v1101
        %v1107 = vmul.f32 %v1090, %v1074
        %v1108 = vmul.f32 %v1094, %v1075
        %v1109 = vmul.f32 %v1098, %v1076
        %v1110 = vmul.f32 %v1102, %v1077
        %v1111 = vmul.f32 %v1090, %v1078
        %v1112 = vmul.f32 %v1094, %v1079
        %v1113 = vmul.f32 %v1098, %v1080
        %v1114 = vmul.f32 %v1102, %v1081
        %v1115 = vmul.f32 %v1090, %v1082
        %v1116 = vmul.f32 %v1094, %v1083
        %v1117 = vmul.f32 %v1098, %v1084
        %v1118 = vmul.f32 %v1102, %v1085
        %vm1131 = vcmask 1042432
        %v1132 = vrot.slane %v1107, 5
        %v1133 = vrot.slane %v1111, 5
        %v1134 = vsel %vm1131, %v1132, %v1133
        %v1135 = vrot.slane %v1108, 5
        %v1136 = vrot.slane %v1112, 5
        %v1137 = vsel %vm1131, %v1135, %v1136
        %v1138 = vrot.slane %v1109, 5
        %v1139 = vrot.slane %v1113, 5
        %v1140 = vsel %vm1131, %v1138, %v1139
        %v1141 = vrot.slane %v1110, 5
        %v1142 = vrot.slane %v1114, 5
        %v1143 = vsel %vm1131, %v1141, %v1142
        %v1144 = vrot.slane %v1115, 5
        %v1145 = vsel %vm1131, %v1133, %v1144
        %v1146 = vrot.slane %v1116, 5
        %v1147 = vsel %vm1131, %v1136, %v1146
        %v1148 = vrot.slane %v1117, 5
        %v1149 = vsel %vm1131, %v1139, %v1148
        %v1150 = vrot.slane %v1118, 5
        %v1151 = vsel %vm1131, %v1142, %v1150
        %v1160 = vadd.f32 %v1065, %v1134
        %v1161 = vadd.f32 %v1066, %v1137
        %v1162 = vadd.f32 %v1067, %v1140
        %v1163 = vadd.f32 %v1068, %v1143
        %v1164 = vadd.f32 %v1069, %v1145
        %v1165 = vadd.f32 %v1070, %v1147
        %v1166 = vadd.f32 %v1071, %v1149
        %v1167 = vadd.f32 %v1072, %v1151
        %s1168 = scalar_lea.vmem %s2, 1
        %v1169 = vld [vmem:[%s1168] ss:$4 sm:$0xf]
        %v1170 = vld [vmem:[#allocation3] sm:$0xc0]
        %v1171 = vld [vmem:[#allocation3 + $0x8] sm:$0xc0]
        %v1172 = vld [vmem:[#allocation3 + $0x10] sm:$0xc0]
        %v1173 = vld [vmem:[#allocation3 + $0x18] sm:$0xc0]
        %v1174 = vld [vmem:[#allocation3 + $0x40] sm:$0x3f]
        %v1175 = vld [vmem:[#allocation3 + $0x48] sm:$0x3f]
        %v1176 = vld [vmem:[#allocation3 + $0x50] sm:$0x3f]
        %v1177 = vld [vmem:[#allocation3 + $0x58] sm:$0x3f]
        %v1179 = vlaneseq
        %v1180 = vshrl.u32 %v1179, 7
        %v1181 = vsub.s32 0, %v1180
        %v1182 = vrot.slane %v1169, %v1181
        %v1183 = vlaneseq
        %v1184 = vshrl.u32 %v1183, 7
        %v1185 = vsub.s32 1, %v1184
        %v1186 = vrot.slane %v1169, %v1185
        %v1187 = vlaneseq
        %v1188 = vshrl.u32 %v1187, 7
        %v1189 = vsub.s32 2, %v1188
        %v1190 = vrot.slane %v1169, %v1189
        %v1191 = vlaneseq
        %v1192 = vshrl.u32 %v1191, 7
        %v1193 = vsub.s32 3, %v1192
        %v1194 = vrot.slane %v1169, %v1193
        %v1199 = vmul.f32 %v1182, %v1170
        %v1200 = vmul.f32 %v1186, %v1171
        %v1201 = vmul.f32 %v1190, %v1172
        %v1202 = vmul.f32 %v1194, %v1173
        %v1203 = vmul.f32 %v1182, %v1078
        %v1204 = vmul.f32 %v1186, %v1079
        %v1205 = vmul.f32 %v1190, %v1080
        %v1206 = vmul.f32 %v1194, %v1081
        %v1207 = vmul.f32 %v1182, %v1174
        %v1208 = vmul.f32 %v1186, %v1175
        %v1209 = vmul.f32 %v1190, %v1176
        %v1210 = vmul.f32 %v1194, %v1177
        %vm1223 = vcmask 1041408
        %v1224 = vrot.slane %v1199, 6
        %v1225 = vrot.slane %v1203, 6
        %v1226 = vsel %vm1223, %v1224, %v1225
        %v1227 = vrot.slane %v1200, 6
        %v1228 = vrot.slane %v1204, 6
        %v1229 = vsel %vm1223, %v1227, %v1228
        %v1230 = vrot.slane %v1201, 6
        %v1231 = vrot.slane %v1205, 6
        %v1232 = vsel %vm1223, %v1230, %v1231
        %v1233 = vrot.slane %v1202, 6
        %v1234 = vrot.slane %v1206, 6
        %v1235 = vsel %vm1223, %v1233, %v1234
        %v1236 = vrot.slane %v1207, 6
        %v1237 = vsel %vm1223, %v1225, %v1236
        %v1238 = vrot.slane %v1208, 6
        %v1239 = vsel %vm1223, %v1228, %v1238
        %v1240 = vrot.slane %v1209, 6
        %v1241 = vsel %vm1223, %v1231, %v1240
        %v1242 = vrot.slane %v1210, 6
        %v1243 = vsel %vm1223, %v1234, %v1242
        %v1252 = vadd.f32 %v1160, %v1226
        %v1253 = vadd.f32 %v1161, %v1229
        %v1254 = vadd.f32 %v1162, %v1232
        %v1255 = vadd.f32 %v1163, %v1235
        %v1256 = vadd.f32 %v1164, %v1237
        %v1257 = vadd.f32 %v1165, %v1239
        %v1258 = vadd.f32 %v1166, %v1241
        %v1259 = vadd.f32 %v1167, %v1243
        %s1260 = scalar_lea.vmem %s2, 2
        %v1261 = vld [vmem:[%s1260] ss:$4 sm:$0xf]
        %v1262 = vld [vmem:[#allocation3] sm:$0x80]
        %v1263 = vld [vmem:[#allocation3 + $0x8] sm:$0x80]
        %v1264 = vld [vmem:[#allocation3 + $0x10] sm:$0x80]
        %v1265 = vld [vmem:[#allocation3 + $0x18] sm:$0x80]
        %v1266 = vld [vmem:[#allocation3 + $0x40] sm:$0x7f]
        %v1267 = vld [vmem:[#allocation3 + $0x48] sm:$0x7f]
        %v1268 = vld [vmem:[#allocation3 + $0x50] sm:$0x7f]
        %v1269 = vld [vmem:[#allocation3 + $0x58] sm:$0x7f]
        %v1271 = vlaneseq
        %v1272 = vshrl.u32 %v1271, 7
        %v1273 = vsub.s32 0, %v1272
        %v1274 = vrot.slane %v1261, %v1273
        %v1275 = vlaneseq
        %v1276 = vshrl.u32 %v1275, 7
        %v1277 = vsub.s32 1, %v1276
        %v1278 = vrot.slane %v1261, %v1277
        %v1279 = vlaneseq
        %v1280 = vshrl.u32 %v1279, 7
        %v1281 = vsub.s32 2, %v1280
        %v1282 = vrot.slane %v1261, %v1281
        %v1283 = vlaneseq
        %v1284 = vshrl.u32 %v1283, 7
        %v1285 = vsub.s32 3, %v1284
        %v1286 = vrot.slane %v1261, %v1285
        %v1291 = vmul.f32 %v1274, %v1262
        %v1292 = vmul.f32 %v1278, %v1263
        %v1293 = vmul.f32 %v1282, %v1264
        %v1294 = vmul.f32 %v1286, %v1265
        %v1295 = vmul.f32 %v1274, %v1078
        %v1296 = vmul.f32 %v1278, %v1079
        %v1297 = vmul.f32 %v1282, %v1080
        %v1298 = vmul.f32 %v1286, %v1081
        %v1299 = vmul.f32 %v1274, %v1266
        %v1300 = vmul.f32 %v1278, %v1267
        %v1301 = vmul.f32 %v1282, %v1268
        %v1302 = vmul.f32 %v1286, %v1269
        %vm1315 = vcmask 1040384
        %v1316 = vrot.slane %v1291, 7
        %v1317 = vrot.slane %v1295, 7
        %v1318 = vsel %vm1315, %v1316, %v1317
        %v1319 = vrot.slane %v1292, 7
        %v1320 = vrot.slane %v1296, 7
        %v1321 = vsel %vm1315, %v1319, %v1320
        %v1322 = vrot.slane %v1293, 7
        %v1323 = vrot.slane %v1297, 7
        %v1324 = vsel %vm1315, %v1322, %v1323
        %v1325 = vrot.slane %v1294, 7
        %v1326 = vrot.slane %v1298, 7
        %v1327 = vsel %vm1315, %v1325, %v1326
        %v1328 = vrot.slane %v1299, 7
        %v1329 = vsel %vm1315, %v1317, %v1328
        %v1330 = vrot.slane %v1300, 7
        %v1331 = vsel %vm1315, %v1320, %v1330
        %v1332 = vrot.slane %v1301, 7
        %v1333 = vsel %vm1315, %v1323, %v1332
        %v1334 = vrot.slane %v1302, 7
        %v1335 = vsel %vm1315, %v1326, %v1334
        %v1344 = vadd.f32 %v1252, %v1318
        %v1345 = vadd.f32 %v1253, %v1321
        %v1346 = vadd.f32 %v1254, %v1324
        %v1347 = vadd.f32 %v1255, %v1327
        %v1348 = vadd.f32 %v1256, %v1329
        %v1349 = vadd.f32 %v1257, %v1331
        %v1350 = vadd.f32 %v1258, %v1333
        %v1351 = vadd.f32 %v1259, %v1335
        %v1352 = vand.u32 2147483647, %v1344
        %v1353 = vand.u32 2147483647, %v1345
        %v1354 = vand.u32 2147483647, %v1346
        %v1355 = vand.u32 2147483647, %v1347
        %v1356 = vand.u32 2147483647, %v1348
        %v1357 = vand.u32 2147483647, %v1349
        %v1358 = vand.u32 2147483647, %v1350
        %v1359 = vand.u32 2147483647, %v1351
        %v1360 = vsub.f32 0.0, %v1352
        %v1361 = vsub.f32 0.0, %v1353
        %v1362 = vsub.f32 0.0, %v1354
        %v1363 = vsub.f32 0.0, %v1355
        %v1364 = vsub.f32 0.0, %v1356
        %v1365 = vsub.f32 0.0, %v1357
        %v1366 = vsub.f32 0.0, %v1358
        %v1367 = vsub.f32 0.0, %v1359
        %v1368 = vmul.f32 %v1360, 1.442695
        %v1369 = vpow.pop %v1368
        %v1370 = vmul.f32 %v1361, 1.442695
        %v1371 = vpow.pop %v1370
        %v1372 = vmul.f32 %v1362, 1.442695
        %v1373 = vpow.pop %v1372
        %v1374 = vmul.f32 %v1363, 1.442695
        %v1375 = vpow.pop %v1374
        %v1376 = vmul.f32 %v1364, 1.442695
        %v1377 = vpow.pop %v1376
        %v1378 = vmul.f32 %v1365, 1.442695
        %v1379 = vpow.pop %v1378
        %v1380 = vmul.f32 %v1366, 1.442695
        %v1381 = vpow.pop %v1380
        %v1382 = vmul.f32 %v1367, 1.442695
        %v1383 = vpow.pop %v1382
        %vm1384 = vcmp.ge.f32.partialorder %v1344, 0.0
        %vm1385 = vcmp.ge.f32.partialorder %v1345, 0.0
        %vm1386 = vcmp.ge.f32.partialorder %v1346, 0.0
        %vm1387 = vcmp.ge.f32.partialorder %v1347, 0.0
        %vm1388 = vcmp.ge.f32.partialorder %v1348, 0.0
        %vm1389 = vcmp.ge.f32.partialorder %v1349, 0.0
        %vm1390 = vcmp.ge.f32.partialorder %v1350, 0.0
        %vm1391 = vcmp.ge.f32.partialorder %v1351, 0.0
        %v1392 = vadd.f32 %v1369, 1.0
        %v1393 = vadd.f32 %v1371, 1.0
        %v1394 = vadd.f32 %v1373, 1.0
        %v1395 = vadd.f32 %v1375, 1.0
        %v1396 = vadd.f32 %v1377, 1.0
        %v1397 = vadd.f32 %v1379, 1.0
        %v1398 = vadd.f32 %v1381, 1.0
        %v1399 = vadd.f32 %v1383, 1.0
        %v1400 = vrcp.pop %v1392
        %v1401 = vmul.f32 1.0, %v1400
        %v1402 = vrcp.pop %v1393
        %v1403 = vmul.f32 1.0, %v1402
        %v1404 = vrcp.pop %v1394
        %v1405 = vmul.f32 1.0, %v1404
        %v1406 = vrcp.pop %v1395
        %v1407 = vmul.f32 1.0, %v1406
        %v1408 = vrcp.pop %v1396
        %v1409 = vmul.f32 1.0, %v1408
        %v1410 = vrcp.pop %v1397
        %v1411 = vmul.f32 1.0, %v1410
        %v1412 = vrcp.pop %v1398
        %v1413 = vmul.f32 1.0, %v1412
        %v1414 = vrcp.pop %v1399
        %v1415 = vmul.f32 1.0, %v1414
        %v1416 = vmul.f32 %v1369, %v1400
        %v1417 = vmul.f32 %v1371, %v1402
        %v1418 = vmul.f32 %v1373, %v1404
        %v1419 = vmul.f32 %v1375, %v1406
        %v1420 = vmul.f32 %v1377, %v1408
        %v1421 = vmul.f32 %v1379, %v1410
        %v1422 = vmul.f32 %v1381, %v1412
        %v1423 = vmul.f32 %v1383, %v1414
        %v1424 = vsel %vm1384, %v1401, %v1416
        %v1425 = vsel %vm1385, %v1403, %v1417
        %v1426 = vsel %vm1386, %v1405, %v1418
        %v1427 = vsel %vm1387, %v1407, %v1419
        %v1428 = vsel %vm1388, %v1409, %v1420
        %v1429 = vsel %vm1389, %v1411, %v1421
        %v1430 = vsel %vm1390, %v1413, %v1422
        %v1431 = vsel %vm1391, %v1415, %v1423
        %v1432 = vmul.f32 %v1344, %v1424
        %v1433 = vmul.f32 %v1345, %v1425
        %v1434 = vmul.f32 %v1346, %v1426
        %v1435 = vmul.f32 %v1347, %v1427
        %v1436 = vmul.f32 %v1348, %v1428
        %v1437 = vmul.f32 %v1349, %v1429
        %v1438 = vmul.f32 %v1350, %v1430
        %v1439 = vmul.f32 %v1351, %v1431
        %1440 = vst [vmem:[#allocation3] sm:$0xe0] %v889
        %1441 = vst [vmem:[#allocation3 + $0x8] sm:$0xe0] %v891
        %1442 = vst [vmem:[#allocation3 + $0x10] sm:$0xe0] %v932
        %1443 = vst [vmem:[#allocation3 + $0x18] sm:$0xe0] %v934
        %v1444 = vlaneseq
        %v1445 = vshrl.u32 %v1444, 7
        %v1446 = vadd.s32 %v1445, 8
        %v1447 = vlaneseq
        %v1448 = vand.u32 %v1447, 127
        %vm1449 = vcmp.le.s32.totalorder %v1448, %v1445
        %vm1450 = vcmp.le.s32.totalorder %v1448, %v1446
        %v1451 = vsel %vm1449, 1, 0
        %v1452 = vsel %vm1450, 1, 0
        %v1453 = vcvt.s32.f32 %v1451
        %v1454 = vcvt.s32.f32 %v1452
        %vm1455 = vcmp.ge.s32.totalorder %v1448, %v1445
        %vm1456 = vcmp.ge.s32.totalorder %v1448, %v1446
        %v1457 = vsel %vm1455, 1, 0
        %v1458 = vsel %vm1456, 1, 0
        %v1459 = vcvt.s32.f32 %v1457
        %v1460 = vcvt.s32.f32 %v1458
        %v1461 = vld [vmem:[%s5] sm:$0x1]
        %v1463 = vlaneseq
        %v1464 = vshrl.u32 %v1463, 7
        %v1465 = vsub.s32 0, %v1464
        %v1466 = vrot.slane %v1461, %v1465
        %v1468 = vmul.f32 %v1002, %v1466
        %v1469 = vmul.f32 %v1003, %v1466
        %vm1470 = vcmask 130048
        %v1472 = vsel %vm1470, %v1453, 0
        %v1475 = vsel %vm1470, %v1454, 0
        %1477 = vmatprep.subr.mxu0 0.0
        %1478 = vmatpush1.msra.mxu0 %v1468
        %1479 = vmatprep.subr.mxu0 0.0
        %1480 = vmatpush1.msra.mxu0 %v1469
        %1481 = vmatprep.subr.mxu0 0.0
        %1482 = vmatpush1.msra.mxu0 0.0
        %1483 = vmatprep.subr.mxu0 0.0
        %1484 = vmatpush1.msra.mxu0 0.0
        %1485 = vmatprep.subr.mxu0 0.0
        %1486 = vmatpush1.msra.mxu0 0.0
        %1487 = vmatprep.subr.mxu0 0.0
        %1488 = vmatpush1.msra.mxu0 0.0
        %1489 = vmatprep.subr.mxu0 0.0
        %1490 = vmatpush1.msra.mxu0 0.0
        %1491 = vmatprep.subr.mxu0 0.0
        %1492 = vmatpush1.msra.mxu0 0.0
        %1493 = vmatprep.subr.mxu0 0.0
        %1494 = vmatpush1.msra.mxu0 0.0
        %1495 = vmatprep.subr.mxu0 0.0
        %1496 = vmatpush1.msra.mxu0 0.0
        %1497 = vmatprep.subr.mxu0 0.0
        %1498 = vmatpush1.msra.mxu0 0.0
        %1499 = vmatprep.subr.mxu0 0.0
        %1500 = vmatpush1.msra.mxu0 0.0
        %1501 = vmatprep.subr.mxu0 0.0
        %1502 = vmatpush1.msra.mxu0 0.0
        %1503 = vmatprep.subr.mxu0 0.0
        %1504 = vmatpush1.msra.mxu0 0.0
        %1505 = vmatprep.subr.mxu0 0.0
        %1506 = vmatpush1.msra.mxu0 0.0
        %1507 = vmatprep.subr.mxu0 0.0
        %1508 = vmatpush1.msra.mxu0 0.0
        %1509 = vmatprep.subr.mxu0 0.0
        %1510 = vmatpush1.msra.mxu0 0.0
        %1511 = vmatprep.subr.mxu0 0.0
        %1512 = vmatpush1.msra.mxu0 0.0
        %1513 = vmatprep.subr.mxu0 0.0
        %1514 = vmatpush1.msra.mxu0 0.0
        %1515 = vmatprep.subr.mxu0 0.0
        %1516 = vmatpush1.msra.mxu0 0.0
        %1517 = vmatprep.subr.mxu0 0.0
        %1518 = vmatpush1.msra.mxu0 0.0
        %1519 = vmatprep.subr.mxu0 0.0
        %1520 = vmatpush1.msra.mxu0 0.0
        %1521 = vmatprep.subr.mxu0 0.0
        %1522 = vmatpush1.msra.mxu0 0.0
        %1523 = vmatprep.subr.mxu0 0.0
        %1524 = vmatpush1.msra.mxu0 0.0
        %1525 = vmatprep.subr.mxu0 0.0
        %1526 = vmatpush1.msra.mxu0 0.0
        %1527 = vmatprep.subr.mxu0 0.0
        %1528 = vmatpush1.msra.mxu0 0.0
        %1529 = vmatprep.subr.mxu0 0.0
        %1530 = vmatpush1.msra.mxu0 0.0
        %1531 = vmatprep.subr.mxu0 0.0
        %1532 = vmatpush1.msra.mxu0 0.0
        %1533 = vmatprep.subr.mxu0 0.0
        %1534 = vmatpush1.msra.mxu0 0.0
        %1535 = vmatprep.subr.mxu0 0.0
        %1536 = vmatpush1.msra.mxu0 0.0
        %1537 = vmatprep.subr.mxu0 0.0
        %1538 = vmatpush1.msra.mxu0 0.0
        %1539 = vmatprep.subr.mxu0 0.0
        %1540 = vmatpush1.msra.mxu0 0.0
        %1541 = vmatprep.mubr.f32.mxu0 0.0
        %1542 = vmatmul.mubr.f32.gmra.mrb[0].mxu0 %v1472
        %v1543 = vpop.f32.mrb[0].mxu0
        %v1544 = vadd.f32 0.0, %v1543
        %v1545 = vpop.f32.mrb[0].mxu0
        %1546 = vmatprep.mubr.f32.mxu0 0.0
        %1547 = vmatmul.mubr.f32.gmra.mrb[0].mxu0 %v1475
        %v1548 = vpop.f32.mrb[0].mxu0
        %v1549 = vadd.f32 0.0, %v1548
        %v1550 = vpop.f32.mrb[0].mxu0
        %1551 = vdwg.mxu0
        %1552 = vxpose.xlu0.b32.start [1/16] %v1468, 128
        %1553 = vxpose.xlu0.b32.cont [2/16] %v1469, 128
        %1554 = vxpose.xlu0.b32.cont [3/16] 0.0, 128
        %1555 = vxpose.xlu0.b32.cont [4/16] 0.0, 128
        %1556 = vxpose.xlu0.b32.cont [5/16] 0.0, 128
        %1557 = vxpose.xlu0.b32.cont [6/16] 0.0, 128
        %1558 = vxpose.xlu0.b32.cont [7/16] 0.0, 128
        %1559 = vxpose.xlu0.b32.cont [8/16] 0.0, 128
        %1560 = vxpose.xlu0.b32.cont [9/16] 0.0, 128
        %1561 = vxpose.xlu0.b32.cont [10/16] 0.0, 128
        %1562 = vxpose.xlu0.b32.cont [11/16] 0.0, 128
        %1563 = vxpose.xlu0.b32.cont [12/16] 0.0, 128
        %1564 = vxpose.xlu0.b32.cont [13/16] 0.0, 128
        %1565 = vxpose.xlu0.b32.cont [14/16] 0.0, 128
        %1566 = vxpose.xlu0.b32.cont [15/16] 0.0, 128
        %1567 = vxpose.xlu0.b32.end [16/16] 0.0, 128
        %v1568 = vpop.trf.xlu0
        %v1569 = vpop.trf.xlu0
        %v1570 = vpop.trf.xlu0
        %v1571 = vpop.trf.xlu0
        %v1572 = vpop.trf.xlu0
        %v1573 = vpop.trf.xlu0
        %v1574 = vpop.trf.xlu0
        %v1575 = vpop.trf.xlu0
        %v1576 = vpop.trf.xlu0
        %v1577 = vpop.trf.xlu0
        %v1578 = vpop.trf.xlu0
        %v1579 = vpop.trf.xlu0
        %v1580 = vpop.trf.xlu0
        %v1581 = vpop.trf.xlu0
        %v1582 = vpop.trf.xlu0
        %v1583 = vpop.trf.xlu0
        %v1585 = vsel %vm1470, %v1568, 0
        %1587 = vmatprep.subr.mxu0 0.0
        %1588 = vmatpush1.msra.mxu0 %v1459
        %1589 = vmatprep.subr.mxu0 0.0
        %1590 = vmatpush1.msra.mxu0 %v1460
        %1591 = vmatprep.subr.mxu0 0.0
        %1592 = vmatpush1.msra.mxu0 0.0
        %1593 = vmatprep.subr.mxu0 0.0
        %1594 = vmatpush1.msra.mxu0 0.0
        %1595 = vmatprep.subr.mxu0 0.0
        %1596 = vmatpush1.msra.mxu0 0.0
        %1597 = vmatprep.subr.mxu0 0.0
        %1598 = vmatpush1.msra.mxu0 0.0
        %1599 = vmatprep.subr.mxu0 0.0
        %1600 = vmatpush1.msra.mxu0 0.0
        %1601 = vmatprep.subr.mxu0 0.0
        %1602 = vmatpush1.msra.mxu0 0.0
        %1603 = vmatprep.subr.mxu0 0.0
        %1604 = vmatpush1.msra.mxu0 0.0
        %1605 = vmatprep.subr.mxu0 0.0
        %1606 = vmatpush1.msra.mxu0 0.0
        %1607 = vmatprep.subr.mxu0 0.0
        %1608 = vmatpush1.msra.mxu0 0.0
        %1609 = vmatprep.subr.mxu0 0.0
        %1610 = vmatpush1.msra.mxu0 0.0
        %1611 = vmatprep.subr.mxu0 0.0
        %1612 = vmatpush1.msra.mxu0 0.0
        %1613 = vmatprep.subr.mxu0 0.0
        %1614 = vmatpush1.msra.mxu0 0.0
        %1615 = vmatprep.subr.mxu0 0.0
        %1616 = vmatpush1.msra.mxu0 0.0
        %1617 = vmatprep.subr.mxu0 0.0
        %1618 = vmatpush1.msra.mxu0 0.0
        %1619 = vmatprep.subr.mxu0 0.0
        %1620 = vmatpush1.msra.mxu0 0.0
        %1621 = vmatprep.subr.mxu0 0.0
        %1622 = vmatpush1.msra.mxu0 0.0
        %1623 = vmatprep.subr.mxu0 0.0
        %1624 = vmatpush1.msra.mxu0 0.0
        %1625 = vmatprep.subr.mxu0 0.0
        %1626 = vmatpush1.msra.mxu0 0.0
        %1627 = vmatprep.subr.mxu0 0.0
        %1628 = vmatpush1.msra.mxu0 0.0
        %1629 = vmatprep.subr.mxu0 0.0
        %1630 = vmatpush1.msra.mxu0 0.0
        %1631 = vmatprep.subr.mxu0 0.0
        %1632 = vmatpush1.msra.mxu0 0.0
        %1633 = vmatprep.subr.mxu0 0.0
        %1634 = vmatpush1.msra.mxu0 0.0
        %1635 = vmatprep.subr.mxu0 0.0
        %1636 = vmatpush1.msra.mxu0 0.0
        %1637 = vmatprep.subr.mxu0 0.0
        %1638 = vmatpush1.msra.mxu0 0.0
        %1639 = vmatprep.subr.mxu0 0.0
        %1640 = vmatpush1.msra.mxu0 0.0
        %1641 = vmatprep.subr.mxu0 0.0
        %1642 = vmatpush1.msra.mxu0 0.0
        %1643 = vmatprep.subr.mxu0 0.0
        %1644 = vmatpush1.msra.mxu0 0.0
        %1645 = vmatprep.subr.mxu0 0.0
        %1646 = vmatpush1.msra.mxu0 0.0
        %1647 = vmatprep.subr.mxu0 0.0
        %1648 = vmatpush1.msra.mxu0 0.0
        %1649 = vmatprep.subr.mxu0 0.0
        %1650 = vmatpush1.msra.mxu0 0.0
        %1651 = vmatprep.mubr.f32.mxu0 0.0
        %1652 = vmatmul.mubr.f32.gmra.mrb[0].mxu0 %v1585
        %v1653 = vpop.f32.mrb[0].mxu0
        %v1654 = vadd.f32 0.0, %v1653
        %v1655 = vpop.f32.mrb[0].mxu0
        %1656 = vdwg.mxu0
        %v1657 = vmul.f32 %v1544, 1.442695
        %v1658 = vpow.pop %v1657
        %v1659 = vmul.f32 %v1549, 1.442695
        %v1660 = vpow.pop %v1659
        %v1661 = vlaneseq
        %v1662 = vshrl.u32 %v1661, 7
        %v1663 = vsub.s32 7, %v1662
        %v1664 = vrot.slane %v1549, %v1663
        %v1665 = vsub.f32 %v1664, %v1544
        %v1666 = vsub.f32 %v1664, %v1549
        %v1667 = vmul.f32 %v1665, 1.442695
        %v1668 = vpow.pop %v1667
        %v1669 = vmul.f32 %v1666, 1.442695
        %v1670 = vpow.pop %v1669
        %v1671 = vmul.f32 %v1668, %v1002
        %v1672 = vmul.f32 %v1670, %v1003
        %v1673 = vpack.c.bf16 %v1439, %v1435
        %v1674 = vpack.c.bf16 %v1438, %v1434
        %1675 = vmatprep.subr.bf16.mxu0 0
        %1676 = vmatpush1.bf16.xpose.msra.mxu0 %v1674
        %1677 = vmatprep.subr.bf16.mxu0 0
        %1678 = vmatpush1.bf16.xpose.msra.mxu0 0
        %1679 = vmatprep.subr.bf16.mxu0 0
        %1680 = vmatpush1.bf16.xpose.msra.mxu0 0
        %1681 = vmatprep.subr.bf16.mxu0 0
        %1682 = vmatpush1.bf16.xpose.msra.mxu0 0
        %1683 = vmatprep.subr.bf16.mxu0 0
        %1684 = vmatpush1.bf16.xpose.msra.mxu0 0
        %1685 = vmatprep.subr.bf16.mxu0 0
        %1686 = vmatpush1.bf16.xpose.msra.mxu0 0
        %1687 = vmatprep.subr.bf16.mxu0 0
        %1688 = vmatpush1.bf16.xpose.msra.mxu0 0
        %1689 = vmatprep.subr.bf16.mxu0 0
        %1690 = vmatpush1.bf16.xpose.msra.mxu0 0
        %1691 = vmatprep.subr.bf16.mxu0 0
        %1692 = vmatpush1.bf16.xpose.msra.mxu0 0
        %1693 = vmatprep.subr.bf16.mxu0 0
        %1694 = vmatpush1.bf16.xpose.msra.mxu0 0
        %1695 = vmatprep.subr.bf16.mxu0 0
        %1696 = vmatpush1.bf16.xpose.msra.mxu0 0
        %1697 = vmatprep.subr.bf16.mxu0 0
        %1698 = vmatpush1.bf16.xpose.msra.mxu0 0
        %1699 = vmatprep.subr.bf16.mxu0 0
        %1700 = vmatpush1.bf16.xpose.msra.mxu0 0
        %1701 = vmatprep.subr.bf16.mxu0 0
        %1702 = vmatpush1.bf16.xpose.msra.mxu0 0
        %1703 = vmatprep.subr.bf16.mxu0 0
        %1704 = vmatpush1.bf16.xpose.msra.mxu0 0
        %1705 = vmatprep.subr.bf16.mxu0 0
        %1706 = vmatpush1.bf16.xpose.msra.mxu0 0
        %1707 = vmatprep.mubr.bf16.mxu0 0
        %1708 = vmatmul.mubr.bf16.gmra.mrb[0].mxu0 %v1673
        %v1709 = vpop.f32.mrb[0].mxu0
        %v1710 = vadd.f32 0.0, %v1709
        %v1711 = vpop.f32.mrb[0].mxu0
        %v1712 = vpop.f32.mrb[0].mxu0
        %v1713 = vadd.f32 0.0, %v1712
        %v1714 = vpop.f32.mrb[0].mxu0
        %1715 = vdwg.mxu0
        %v1716 = vld [vmem:[#allocation2] sm:$0xff]
        %v1717 = vld [vmem:[#allocation2 + $0x8] sm:$0xff]
        %v1718 = vld [vmem:[#allocation2 + $0x10] sm:$0xff]
        %v1719 = vld [vmem:[#allocation2 + $0x18] sm:$0xff]
        %v1720 = vld [vmem:[#allocation2 + $0x20] sm:$0xff]
        %v1721 = vld [vmem:[#allocation2 + $0x28] sm:$0xff]
        %v1722 = vld [vmem:[#allocation2 + $0x30] sm:$0xff]
        %v1723 = vld [vmem:[#allocation2 + $0x38] sm:$0xff]
        %v1724 = vld [vmem:[#allocation2 + $0x40] sm:$0xff]
        %v1725 = vld [vmem:[#allocation2 + $0x48] sm:$0xff]
        %v1726 = vld [vmem:[#allocation2 + $0x50] sm:$0xff]
        %v1727 = vld [vmem:[#allocation2 + $0x58] sm:$0xff]
        %v1728 = vld [vmem:[#allocation2 + $0x60] sm:$0xff]
        %v1729 = vld [vmem:[#allocation2 + $0x68] sm:$0xff]
        %v1730 = vld [vmem:[#allocation2 + $0x70] sm:$0xff]
        %v1731 = vld [vmem:[#allocation2 + $0x78] sm:$0xff]
        %v1732 = vld [vmem:[#allocation2 + $0x80] sm:$0xff]
        %v1733 = vld [vmem:[#allocation2 + $0x88] sm:$0xff]
        %v1734 = vld [vmem:[#allocation2 + $0x90] sm:$0xff]
        %v1735 = vld [vmem:[#allocation2 + $0x98] sm:$0xff]
        %v1736 = vld [vmem:[#allocation2 + $0xa0] sm:$0xff]
        %v1737 = vld [vmem:[#allocation2 + $0xa8] sm:$0xff]
        %v1738 = vld [vmem:[#allocation2 + $0xb0] sm:$0xff]
        %v1739 = vld [vmem:[#allocation2 + $0xb8] sm:$0xff]
        %v1740 = vld [vmem:[#allocation2 + $0xc0] sm:$0xff]
        %v1741 = vld [vmem:[#allocation2 + $0xc8] sm:$0xff]
        %v1742 = vld [vmem:[#allocation2 + $0xd0] sm:$0xff]
        %v1743 = vld [vmem:[#allocation2 + $0xd8] sm:$0xff]
        %v1744 = vld [vmem:[#allocation2 + $0xe0] sm:$0xff]
        %v1745 = vld [vmem:[#allocation2 + $0xe8] sm:$0xff]
        %v1746 = vld [vmem:[#allocation2 + $0xf0] sm:$0xff]
        %v1747 = vld [vmem:[#allocation2 + $0xf8] sm:$0xff]
        %v1748 = vpack.c.bf16 %v1718, %v1716
        %v1749 = vpack.c.bf16 %v1719, %v1717
        %v1750 = vpack.c.bf16 %v1722, %v1720
        %v1751 = vpack.c.bf16 %v1723, %v1721
        %v1752 = vpack.c.bf16 %v1726, %v1724
        %v1753 = vpack.c.bf16 %v1727, %v1725
        %v1754 = vpack.c.bf16 %v1730, %v1728
        %v1755 = vpack.c.bf16 %v1731, %v1729
        %v1756 = vpack.c.bf16 %v1734, %v1732
        %v1757 = vpack.c.bf16 %v1735, %v1733
        %v1758 = vpack.c.bf16 %v1738, %v1736
        %v1759 = vpack.c.bf16 %v1739, %v1737
        %v1760 = vpack.c.bf16 %v1742, %v1740
        %v1761 = vpack.c.bf16 %v1743, %v1741
        %v1762 = vpack.c.bf16 %v1746, %v1744
        %v1763 = vpack.c.bf16 %v1747, %v1745
        %1764 = vmatprep.subr.bf16.mxu0 %v1749
        %1765 = vmatpush1.bf16.msra.mxu0 %v1748
        %1766 = vmatprep.subr.bf16.mxu0 %v1751
        %1767 = vmatpush1.bf16.msra.mxu0 %v1750
        %1768 = vmatprep.subr.bf16.mxu0 %v1753
        %1769 = vmatpush1.bf16.msra.mxu0 %v1752
        %1770 = vmatprep.subr.bf16.mxu0 %v1755
        %1771 = vmatpush1.bf16.msra.mxu0 %v1754
        %1772 = vmatprep.subr.bf16.mxu0 %v1757
        %1773 = vmatpush1.bf16.msra.mxu0 %v1756
        %1774 = vmatprep.subr.bf16.mxu0 %v1759
        %1775 = vmatpush1.bf16.msra.mxu0 %v1758
        %1776 = vmatprep.subr.bf16.mxu0 %v1761
        %1777 = vmatpush1.bf16.msra.mxu0 %v1760
        %1778 = vmatprep.subr.bf16.mxu0 %v1763
        %1779 = vmatpush1.bf16.msra.mxu0 %v1762
        %1780 = vmatprep.subr.bf16.mxu0 0
        %1781 = vmatpush1.bf16.msra.mxu0 0
        %1782 = vmatprep.subr.bf16.mxu0 0
        %1783 = vmatpush1.bf16.msra.mxu0 0
        %1784 = vmatprep.subr.bf16.mxu0 0
        %1785 = vmatpush1.bf16.msra.mxu0 0
        %1786 = vmatprep.subr.bf16.mxu0 0
        %1787 = vmatpush1.bf16.msra.mxu0 0
        %1788 = vmatprep.subr.bf16.mxu0 0
        %1789 = vmatpush1.bf16.msra.mxu0 0
        %1790 = vmatprep.subr.bf16.mxu0 0
        %1791 = vmatpush1.bf16.msra.mxu0 0
        %1792 = vmatprep.subr.bf16.mxu0 0
        %1793 = vmatpush1.bf16.msra.mxu0 0
        %1794 = vmatprep.subr.bf16.mxu0 0
        %1795 = vmatpush1.bf16.msra.mxu0 0
        %1796 = vmatprep.mubr.bf16.mxu0 0
        %1797 = vmatmul.mubr.bf16.gmra.mrb[0].mxu0 %v1673
        %v1798 = vpop.f32.mrb[0].mxu0
        %v1799 = vadd.f32 0.0, %v1798
        %v1800 = vpop.f32.mrb[0].mxu0
        %v1801 = vadd.f32 0.0, %v1800
        %v1802 = vpop.f32.mrb[0].mxu0
        %v1803 = vadd.f32 0.0, %v1802
        %v1804 = vpop.f32.mrb[0].mxu0
        %v1805 = vadd.f32 0.0, %v1804
        %1806 = vdwg.mxu0
        %1808 = vset.pattern.permute.xlu0 0
        %1809 = vperm.xlu0 %1808, %v1544
        %v1810 = vpop.permute.xlu0 %1809
        %1813 = vset.pattern.permute.xlu0 0
        %1814 = vperm.xlu0 %1813, %v1549
        %v1815 = vpop.permute.xlu0 %1814
        %v1817 = vlaneseq
        %v1818 = vshrl.u32 %v1817, 7
        %v1819 = vsub.s32 0, %v1818
        %v1820 = vrot.slane %v1654, %v1819
        %v1821 = vsub.f32 %v1810, %v1820
        %v1822 = vsub.f32 %v1815, %v1820
        %v1823 = vsel %vm1449, %v1821, -1e+30
        %v1824 = vsel %vm1450, %v1822, -1e+30
        %v1825 = vmul.f32 %v1823, 1.442695
        %v1826 = vpow.pop %v1825
        %v1827 = vmul.f32 %v1824, 1.442695
        %v1828 = vpow.pop %v1827
        %1830 = vset.pattern.permute.xlu0 0
        %1831 = vperm.xlu0 %1830, %v1002
        %v1832 = vpop.permute.xlu0 %1831
        %1835 = vset.pattern.permute.xlu0 0
        %1836 = vperm.xlu0 %1835, %v1003
        %v1837 = vpop.permute.xlu0 %1836
        %v1839 = vmul.f32 %v1832, %v1432
        %v1840 = vmul.f32 %v1837, %v1436
        %v1841 = vmul.f32 %v1710, %v1826
        %v1842 = vmul.f32 %v1713, %v1828
        %v1843 = vpack.c.bf16 %v1842, %v1841
        %v1844 = vpack.c.bf16 %v1840, %v1839
        %1846 = vset.pattern.permute.xlu0 0
        %1847 = vperm.xlu0 %1846, %v1658
        %v1848 = vpop.permute.xlu0 %1847
        %1851 = vset.pattern.permute.xlu0 0
        %1852 = vperm.xlu0 %1851, %v1660
        %v1853 = vpop.permute.xlu0 %1852
        %v1855 = vmul.f32 %v1848, %v1799
        %v1856 = vmul.f32 %v1853, %v1803
        %v1858 = vsel %vm1470, %v1843, 0
        %1860 = vmatprep.subr.bf16.mxu0 0
        %1861 = vmatpush1.bf16.msra.mxu0 %v1844
        %1862 = vmatprep.subr.bf16.mxu0 0
        %1863 = vmatpush1.bf16.msra.mxu0 0
        %1864 = vmatprep.subr.bf16.mxu0 0
        %1865 = vmatpush1.bf16.msra.mxu0 0
        %1866 = vmatprep.subr.bf16.mxu0 0
        %1867 = vmatpush1.bf16.msra.mxu0 0
        %1868 = vmatprep.subr.bf16.mxu0 0
        %1869 = vmatpush1.bf16.msra.mxu0 0
        %1870 = vmatprep.subr.bf16.mxu0 0
        %1871 = vmatpush1.bf16.msra.mxu0 0
        %1872 = vmatprep.subr.bf16.mxu0 0
        %1873 = vmatpush1.bf16.msra.mxu0 0
        %1874 = vmatprep.subr.bf16.mxu0 0
        %1875 = vmatpush1.bf16.msra.mxu0 0
        %1876 = vmatprep.subr.bf16.mxu0 0
        %1877 = vmatpush1.bf16.msra.mxu0 0
        %1878 = vmatprep.subr.bf16.mxu0 0
        %1879 = vmatpush1.bf16.msra.mxu0 0
        %1880 = vmatprep.subr.bf16.mxu0 0
        %1881 = vmatpush1.bf16.msra.mxu0 0
        %1882 = vmatprep.subr.bf16.mxu0 0
        %1883 = vmatpush1.bf16.msra.mxu0 0
        %1884 = vmatprep.subr.bf16.mxu0 0
        %1885 = vmatpush1.bf16.msra.mxu0 0
        %1886 = vmatprep.subr.bf16.mxu0 0
        %1887 = vmatpush1.bf16.msra.mxu0 0
        %1888 = vmatprep.subr.bf16.mxu0 0
        %1889 = vmatpush1.bf16.msra.mxu0 0
        %1890 = vmatprep.subr.bf16.mxu0 0
        %1891 = vmatpush1.bf16.msra.mxu0 0
        %1892 = vmatprep.mubr.bf16.mxu0 0
        %1893 = vmatmul.mubr.bf16.gmra.mrb[0].mxu0 %v1858
        %v1894 = vpop.f32.mrb[0].mxu0
        %v1895 = vadd.f32 %v1855, %v1894
        %v1896 = vpop.f32.mrb[0].mxu0
        %v1897 = vpop.f32.mrb[0].mxu0
        %v1898 = vadd.f32 %v1856, %v1897
        %v1899 = vpop.f32.mrb[0].mxu0
        %1900 = vdwg.mxu0
        %s1901 = sld [smem:[#allocation8]]
        %v1902 = vstv %s1901
        %v1903 = vmul.f32 %v1902, %v1432
        %v1904 = vmul.f32 %v1902, %v1436
        %v1905 = vadd.f32 %v1895, %v1903
        %v1906 = vadd.f32 %v1898, %v1904
        %1908 = vset.pattern.permute.xlu0 0
        %1909 = vperm.xlu0 %1908, %v1671
        %v1910 = vpop.permute.xlu0 %1909
        %1913 = vset.pattern.permute.xlu0 0
        %1914 = vperm.xlu0 %1913, %v1672
        %v1915 = vpop.permute.xlu0 %1914
        %v1917 = vmul.f32 %v1910, %v1432
        %v1918 = vmul.f32 %v1915, %v1436
        %v1919 = vld [vmem:[#allocation2] sm:$0xff]
        %v1920 = vld [vmem:[#allocation2 + $0x10] sm:$0xff]
        %v1921 = vld [vmem:[#allocation2 + $0x20] sm:$0xff]
        %v1922 = vld [vmem:[#allocation2 + $0x30] sm:$0xff]
        %v1923 = vld [vmem:[#allocation2 + $0x40] sm:$0xff]
        %v1924 = vld [vmem:[#allocation2 + $0x50] sm:$0xff]
        %v1925 = vld [vmem:[#allocation2 + $0x60] sm:$0xff]
        %v1926 = vld [vmem:[#allocation2 + $0x70] sm:$0xff]
        %v1927 = vld [vmem:[#allocation2 + $0x80] sm:$0xff]
        %v1928 = vld [vmem:[#allocation2 + $0x90] sm:$0xff]
        %v1929 = vld [vmem:[#allocation2 + $0xa0] sm:$0xff]
        %v1930 = vld [vmem:[#allocation2 + $0xb0] sm:$0xff]
        %v1931 = vld [vmem:[#allocation2 + $0xc0] sm:$0xff]
        %v1932 = vld [vmem:[#allocation2 + $0xd0] sm:$0xff]
        %v1933 = vld [vmem:[#allocation2 + $0xe0] sm:$0xff]
        %v1934 = vld [vmem:[#allocation2 + $0xf0] sm:$0xff]
        %v1935 = vrot.slane %v1660, 7
        %s1936 = vtos %v1935
        %v1937 = vstv %s1936
        %v1939 = vmul.f32 %v1937, %v1919
        %v1940 = vmul.f32 %v1937, %v1920
        %v1941 = vmul.f32 %v1937, %v1921
        %v1942 = vmul.f32 %v1937, %v1922
        %v1943 = vmul.f32 %v1937, %v1923
        %v1944 = vmul.f32 %v1937, %v1924
        %v1945 = vmul.f32 %v1937, %v1925
        %v1946 = vmul.f32 %v1937, %v1926
        %v1947 = vmul.f32 %v1937, %v1927
        %v1948 = vmul.f32 %v1937, %v1928
        %v1949 = vmul.f32 %v1937, %v1929
        %v1950 = vmul.f32 %v1937, %v1930
        %v1951 = vmul.f32 %v1937, %v1931
        %v1952 = vmul.f32 %v1937, %v1932
        %v1953 = vmul.f32 %v1937, %v1933
        %v1954 = vmul.f32 %v1937, %v1934
        %1955 = vst [vmem:[#allocation2] sm:$0xff] %v1939
        %1956 = vst [vmem:[#allocation2 + $0x10] sm:$0xff] %v1940
        %1957 = vst [vmem:[#allocation2 + $0x20] sm:$0xff] %v1941
        %1958 = vst [vmem:[#allocation2 + $0x30] sm:$0xff] %v1942
        %1959 = vst [vmem:[#allocation2 + $0x40] sm:$0xff] %v1943
        %1960 = vst [vmem:[#allocation2 + $0x50] sm:$0xff] %v1944
        %1961 = vst [vmem:[#allocation2 + $0x60] sm:$0xff] %v1945
        %1962 = vst [vmem:[#allocation2 + $0x70] sm:$0xff] %v1946
        %1963 = vst [vmem:[#allocation2 + $0x80] sm:$0xff] %v1947
        %1964 = vst [vmem:[#allocation2 + $0x90] sm:$0xff] %v1948
        %1965 = vst [vmem:[#allocation2 + $0xa0] sm:$0xff] %v1949
        %1966 = vst [vmem:[#allocation2 + $0xb0] sm:$0xff] %v1950
        %1967 = vst [vmem:[#allocation2 + $0xc0] sm:$0xff] %v1951
        %1968 = vst [vmem:[#allocation2 + $0xd0] sm:$0xff] %v1952
        %1969 = vst [vmem:[#allocation2 + $0xe0] sm:$0xff] %v1953
        %1970 = vst [vmem:[#allocation2 + $0xf0] sm:$0xff] %v1954
        %1971 = vset.pattern.permute.xlu0 1
        %1972 = vperm.xlu0 %1971, %v1544
        %v1973 = vpop.permute.xlu0 %1972
        %1975 = vset.pattern.permute.xlu0 1
        %1976 = vperm.xlu0 %1975, %v1549
        %v1977 = vpop.permute.xlu0 %1976
        %v1979 = vlaneseq
        %v1980 = vshrl.u32 %v1979, 7
        %v1981 = vsub.s32 1, %v1980
        %v1982 = vrot.slane %v1654, %v1981
        %v1983 = vsub.f32 %v1973, %v1982
        %v1984 = vsub.f32 %v1977, %v1982
        %v1985 = vsel %vm1449, %v1983, -1e+30
        %v1986 = vsel %vm1450, %v1984, -1e+30
        %v1987 = vmul.f32 %v1985, 1.442695
        %v1988 = vpow.pop %v1987
        %v1989 = vmul.f32 %v1986, 1.442695
        %v1990 = vpow.pop %v1989
        %1991 = vset.pattern.permute.xlu0 1
        %1992 = vperm.xlu0 %1991, %v1002
        %v1993 = vpop.permute.xlu0 %1992
        %1995 = vset.pattern.permute.xlu0 1
        %1996 = vperm.xlu0 %1995, %v1003
        %v1997 = vpop.permute.xlu0 %1996
        %v1999 = vmul.f32 %v1993, %v1433
        %v2000 = vmul.f32 %v1997, %v1437
        %v2001 = vmul.f32 %v1710, %v1988
        %v2002 = vmul.f32 %v1713, %v1990
        %v2003 = vpack.c.bf16 %v2002, %v2001
        %v2004 = vpack.c.bf16 %v2000, %v1999
        %2005 = vset.pattern.permute.xlu0 1
        %2006 = vperm.xlu0 %2005, %v1658
        %v2007 = vpop.permute.xlu0 %2006
        %2009 = vset.pattern.permute.xlu0 1
        %2010 = vperm.xlu0 %2009, %v1660
        %v2011 = vpop.permute.xlu0 %2010
        %v2013 = vmul.f32 %v2007, %v1801
        %v2014 = vmul.f32 %v2011, %v1805
        %v2016 = vsel %vm1470, %v2003, 0
        %2018 = vmatprep.subr.bf16.mxu0 0
        %2019 = vmatpush1.bf16.msra.mxu0 %v2004
        %2020 = vmatprep.subr.bf16.mxu0 0
        %2021 = vmatpush1.bf16.msra.mxu0 0
        %2022 = vmatprep.subr.bf16.mxu0 0
        %2023 = vmatpush1.bf16.msra.mxu0 0
        %2024 = vmatprep.subr.bf16.mxu0 0
        %2025 = vmatpush1.bf16.msra.mxu0 0
        %2026 = vmatprep.subr.bf16.mxu0 0
        %2027 = vmatpush1.bf16.msra.mxu0 0
        %2028 = vmatprep.subr.bf16.mxu0 0
        %2029 = vmatpush1.bf16.msra.mxu0 0
        %2030 = vmatprep.subr.bf16.mxu0 0
        %2031 = vmatpush1.bf16.msra.mxu0 0
        %2032 = vmatprep.subr.bf16.mxu0 0
        %2033 = vmatpush1.bf16.msra.mxu0 0
        %2034 = vmatprep.subr.bf16.mxu0 0
        %2035 = vmatpush1.bf16.msra.mxu0 0
        %2036 = vmatprep.subr.bf16.mxu0 0
        %2037 = vmatpush1.bf16.msra.mxu0 0
        %2038 = vmatprep.subr.bf16.mxu0 0
        %2039 = vmatpush1.bf16.msra.mxu0 0
        %2040 = vmatprep.subr.bf16.mxu0 0
        %2041 = vmatpush1.bf16.msra.mxu0 0
        %2042 = vmatprep.subr.bf16.mxu0 0
        %2043 = vmatpush1.bf16.msra.mxu0 0
        %2044 = vmatprep.subr.bf16.mxu0 0
        %2045 = vmatpush1.bf16.msra.mxu0 0
        %2046 = vmatprep.subr.bf16.mxu0 0
        %2047 = vmatpush1.bf16.msra.mxu0 0
        %2048 = vmatprep.subr.bf16.mxu0 0
        %2049 = vmatpush1.bf16.msra.mxu0 0
        %2050 = vmatprep.mubr.bf16.mxu0 0
        %2051 = vmatmul.mubr.bf16.gmra.mrb[0].mxu0 %v2016
        %v2052 = vpop.f32.mrb[0].mxu0
        %v2053 = vadd.f32 %v2013, %v2052
        %v2054 = vpop.f32.mrb[0].mxu0
        %v2055 = vpop.f32.mrb[0].mxu0
        %v2056 = vadd.f32 %v2014, %v2055
        %v2057 = vpop.f32.mrb[0].mxu0
        %2058 = vdwg.mxu0
        %s2059 = sld [smem:[#allocation8 + $0x1]]
        %v2060 = vstv %s2059
        %v2061 = vmul.f32 %v2060, %v1433
        %v2062 = vmul.f32 %v2060, %v1437
        %v2063 = vadd.f32 %v2053, %v2061
        %v2064 = vadd.f32 %v2056, %v2062
        %2065 = vset.pattern.permute.xlu0 1
        %2066 = vperm.xlu0 %2065, %v1671
        %v2067 = vpop.permute.xlu0 %2066
        %2069 = vset.pattern.permute.xlu0 1
        %2070 = vperm.xlu0 %2069, %v1672
        %v2071 = vpop.permute.xlu0 %2070
        %v2073 = vmul.f32 %v2067, %v1433
        %v2074 = vmul.f32 %v2071, %v1437
        %v2075 = vld [vmem:[#allocation2 + $0x8] sm:$0xff]
        %v2076 = vld [vmem:[#allocation2 + $0x18] sm:$0xff]
        %v2077 = vld [vmem:[#allocation2 + $0x28] sm:$0xff]
        %v2078 = vld [vmem:[#allocation2 + $0x38] sm:$0xff]
        %v2079 = vld [vmem:[#allocation2 + $0x48] sm:$0xff]
        %v2080 = vld [vmem:[#allocation2 + $0x58] sm:$0xff]
        %v2081 = vld [vmem:[#allocation2 + $0x68] sm:$0xff]
        %v2082 = vld [vmem:[#allocation2 + $0x78] sm:$0xff]
        %v2083 = vld [vmem:[#allocation2 + $0x88] sm:$0xff]
        %v2084 = vld [vmem:[#allocation2 + $0x98] sm:$0xff]
        %v2085 = vld [vmem:[#allocation2 + $0xa8] sm:$0xff]
        %v2086 = vld [vmem:[#allocation2 + $0xb8] sm:$0xff]
        %v2087 = vld [vmem:[#allocation2 + $0xc8] sm:$0xff]
        %v2088 = vld [vmem:[#allocation2 + $0xd8] sm:$0xff]
        %v2089 = vld [vmem:[#allocation2 + $0xe8] sm:$0xff]
        %v2090 = vld [vmem:[#allocation2 + $0xf8] sm:$0xff]
        %2091 = vrot.lane.b32.xlu0 %v1935, 127
        %v2092 = vpop.permute.xlu0 %2091
        %s2093 = vtos %v2092
        %v2094 = vstv %s2093
        %v2096 = vmul.f32 %v2094, %v2075
        %v2097 = vmul.f32 %v2094, %v2076
        %v2098 = vmul.f32 %v2094, %v2077
        %v2099 = vmul.f32 %v2094, %v2078
        %v2100 = vmul.f32 %v2094, %v2079
        %v2101 = vmul.f32 %v2094, %v2080
        %v2102 = vmul.f32 %v2094, %v2081
        %v2103 = vmul.f32 %v2094, %v2082
        %v2104 = vmul.f32 %v2094, %v2083
        %v2105 = vmul.f32 %v2094, %v2084
        %v2106 = vmul.f32 %v2094, %v2085
        %v2107 = vmul.f32 %v2094, %v2086
        %v2108 = vmul.f32 %v2094, %v2087
        %v2109 = vmul.f32 %v2094, %v2088
        %v2110 = vmul.f32 %v2094, %v2089
        %v2111 = vmul.f32 %v2094, %v2090
        %2112 = vst [vmem:[#allocation2 + $0x8] sm:$0xff] %v2096
        %2113 = vst [vmem:[#allocation2 + $0x18] sm:$0xff] %v2097
        %2114 = vst [vmem:[#allocation2 + $0x28] sm:$0xff] %v2098
        %2115 = vst [vmem:[#allocation2 + $0x38] sm:$0xff] %v2099
        %2116 = vst [vmem:[#allocation2 + $0x48] sm:$0xff] %v2100
        %2117 = vst [vmem:[#allocation2 + $0x58] sm:$0xff] %v2101
        %2118 = vst [vmem:[#allocation2 + $0x68] sm:$0xff] %v2102
        %2119 = vst [vmem:[#allocation2 + $0x78] sm:$0xff] %v2103
        %2120 = vst [vmem:[#allocation2 + $0x88] sm:$0xff] %v2104
        %2121 = vst [vmem:[#allocation2 + $0x98] sm:$0xff] %v2105
        %2122 = vst [vmem:[#allocation2 + $0xa8] sm:$0xff] %v2106
        %2123 = vst [vmem:[#allocation2 + $0xb8] sm:$0xff] %v2107
        %2124 = vst [vmem:[#allocation2 + $0xc8] sm:$0xff] %v2108
        %2125 = vst [vmem:[#allocation2 + $0xd8] sm:$0xff] %v2109
        %2126 = vst [vmem:[#allocation2 + $0xe8] sm:$0xff] %v2110
        %2127 = vst [vmem:[#allocation2 + $0xf8] sm:$0xff] %v2111
        %v2128 = vpack.c.bf16 %v1918, %v1917
        %v2129 = vpack.c.bf16 %v2074, %v2073
        %2130 = vxpose.xlu0.c.b16.start [1/8] %v1674, 128
        %2131 = vxpose.xlu0.c.b16.cont [2/8] 0, 128
        %2132 = vxpose.xlu0.c.b16.cont [3/8] 0, 128
        %2133 = vxpose.xlu0.c.b16.cont [4/8] 0, 128
        %2134 = vxpose.xlu0.c.b16.cont [5/8] 0, 128
        %2135 = vxpose.xlu0.c.b16.cont [6/8] 0, 128
        %2136 = vxpose.xlu0.c.b16.cont [7/8] 0, 128
        %2137 = vxpose.xlu0.c.b16.end [8/8] 0, 128
        %v2138 = vpop.trf.xlu0
        %v2139 = vpop.trf.xlu0
        %v2140 = vpop.trf.xlu0
        %v2141 = vpop.trf.xlu0
        %v2142 = vpop.trf.xlu0
        %v2143 = vpop.trf.xlu0
        %v2144 = vpop.trf.xlu0
        %v2145 = vpop.trf.xlu0
        %v2147 = vsel %vm1470, %v2138, 0
        %v2150 = vsel %vm1470, %v2139, 0
        %v2153 = vsel %vm1470, %v2140, 0
        %v2156 = vsel %vm1470, %v2141, 0
        %v2159 = vsel %vm1470, %v2142, 0
        %v2162 = vsel %vm1470, %v2143, 0
        %v2165 = vsel %vm1470, %v2144, 0
        %v2168 = vsel %vm1470, %v2145, 0
        %2170 = vmatprep.subr.bf16.mxu0 %v2129
        %2171 = vmatpush1.bf16.msra.mxu0 %v2128
        %2172 = vmatprep.subr.bf16.mxu0 0
        %2173 = vmatpush1.bf16.msra.mxu0 0
        %2174 = vmatprep.subr.bf16.mxu0 0
        %2175 = vmatpush1.bf16.msra.mxu0 0
        %2176 = vmatprep.subr.bf16.mxu0 0
        %2177 = vmatpush1.bf16.msra.mxu0 0
        %2178 = vmatprep.subr.bf16.mxu0 0
        %2179 = vmatpush1.bf16.msra.mxu0 0
        %2180 = vmatprep.subr.bf16.mxu0 0
        %2181 = vmatpush1.bf16.msra.mxu0 0
        %2182 = vmatprep.subr.bf16.mxu0 0
        %2183 = vmatpush1.bf16.msra.mxu0 0
        %2184 = vmatprep.subr.bf16.mxu0 0
        %2185 = vmatpush1.bf16.msra.mxu0 0
        %2186 = vmatprep.subr.bf16.mxu0 0
        %2187 = vmatpush1.bf16.msra.mxu0 0
        %2188 = vmatprep.subr.bf16.mxu0 0
        %2189 = vmatpush1.bf16.msra.mxu0 0
        %2190 = vmatprep.subr.bf16.mxu0 0
        %2191 = vmatpush1.bf16.msra.mxu0 0
        %2192 = vmatprep.subr.bf16.mxu0 0
        %2193 = vmatpush1.bf16.msra.mxu0 0
        %2194 = vmatprep.subr.bf16.mxu0 0
        %2195 = vmatpush1.bf16.msra.mxu0 0
        %2196 = vmatprep.subr.bf16.mxu0 0
        %2197 = vmatpush1.bf16.msra.mxu0 0
        %2198 = vmatprep.subr.bf16.mxu0 0
        %2199 = vmatpush1.bf16.msra.mxu0 0
        %2200 = vmatprep.subr.bf16.mxu0 0
        %2201 = vmatpush1.bf16.msra.mxu0 0
        %2202 = vmatprep.mubr.bf16.mxu0 0
        %2203 = vmatmul.mubr.bf16.gmra.mrb[0].mxu0 %v2147
        %v2204 = vpop.f32.mrb[0].mxu0
        %v2205 = vadd.f32 0.0, %v2204
        %v2206 = vpop.f32.mrb[0].mxu0
        %v2207 = vadd.f32 0.0, %v2206
        %v2208 = vpop.f32.mrb[0].mxu0
        %v2209 = vadd.f32 0.0, %v2208
        %v2210 = vpop.f32.mrb[0].mxu0
        %v2211 = vadd.f32 0.0, %v2210
        %2212 = vmatprep.mubr.bf16.mxu0 0
        %2213 = vmatmul.mubr.bf16.gmra.mrb[0].mxu0 %v2150
        %v2214 = vpop.f32.mrb[0].mxu0
        %v2215 = vadd.f32 0.0, %v2214
        %v2216 = vpop.f32.mrb[0].mxu0
        %v2217 = vadd.f32 0.0, %v2216
        %v2218 = vpop.f32.mrb[0].mxu0
        %v2219 = vadd.f32 0.0, %v2218
        %v2220 = vpop.f32.mrb[0].mxu0
        %v2221 = vadd.f32 0.0, %v2220
        %2222 = vmatprep.mubr.bf16.mxu0 0
        %2223 = vmatmul.mubr.bf16.gmra.mrb[0].mxu0 %v2153
        %v2224 = vpop.f32.mrb[0].mxu0
        %v2225 = vadd.f32 0.0, %v2224
        %v2226 = vpop.f32.mrb[0].mxu0
        %v2227 = vadd.f32 0.0, %v2226
        %v2228 = vpop.f32.mrb[0].mxu0
        %v2229 = vadd.f32 0.0, %v2228
        %v2230 = vpop.f32.mrb[0].mxu0
        %v2231 = vadd.f32 0.0, %v2230
        %2232 = vmatprep.mubr.bf16.mxu0 0
        %2233 = vmatmul.mubr.bf16.gmra.mrb[0].mxu0 %v2156
        %v2234 = vpop.f32.mrb[0].mxu0
        %v2235 = vadd.f32 0.0, %v2234
        %v2236 = vpop.f32.mrb[0].mxu0
        %v2237 = vadd.f32 0.0, %v2236
        %v2238 = vpop.f32.mrb[0].mxu0
        %v2239 = vadd.f32 0.0, %v2238
        %v2240 = vpop.f32.mrb[0].mxu0
        %v2241 = vadd.f32 0.0, %v2240
        %2242 = vmatprep.mubr.bf16.mxu0 0
        %2243 = vmatmul.mubr.bf16.gmra.mrb[0].mxu0 %v2159
        %v2244 = vpop.f32.mrb[0].mxu0
        %v2245 = vadd.f32 0.0, %v2244
        %v2246 = vpop.f32.mrb[0].mxu0
        %v2247 = vadd.f32 0.0, %v2246
        %v2248 = vpop.f32.mrb[0].mxu0
        %v2249 = vadd.f32 0.0, %v2248
        %v2250 = vpop.f32.mrb[0].mxu0
        %v2251 = vadd.f32 0.0, %v2250
        %2252 = vmatprep.mubr.bf16.mxu0 0
        %2253 = vmatmul.mubr.bf16.gmra.mrb[0].mxu0 %v2162
        %v2254 = vpop.f32.mrb[0].mxu0
        %v2255 = vadd.f32 0.0, %v2254
        %v2256 = vpop.f32.mrb[0].mxu0
        %v2257 = vadd.f32 0.0, %v2256
        %v2258 = vpop.f32.mrb[0].mxu0
        %v2259 = vadd.f32 0.0, %v2258
        %v2260 = vpop.f32.mrb[0].mxu0
        %v2261 = vadd.f32 0.0, %v2260
        %2262 = vmatprep.mubr.bf16.mxu0 0
        %2263 = vmatmul.mubr.bf16.gmra.mrb[0].mxu0 %v2165
        %v2264 = vpop.f32.mrb[0].mxu0
        %v2265 = vadd.f32 0.0, %v2264
        %v2266 = vpop.f32.mrb[0].mxu0
        %v2267 = vadd.f32 0.0, %v2266
        %v2268 = vpop.f32.mrb[0].mxu0
        %v2269 = vadd.f32 0.0, %v2268
        %v2270 = vpop.f32.mrb[0].mxu0
        %v2271 = vadd.f32 0.0, %v2270
        %2272 = vmatprep.mubr.bf16.mxu0 0
        %2273 = vmatmul.mubr.bf16.gmra.mrb[0].mxu0 %v2168
        %v2274 = vpop.f32.mrb[0].mxu0
        %v2275 = vadd.f32 0.0, %v2274
        %v2276 = vpop.f32.mrb[0].mxu0
        %v2277 = vadd.f32 0.0, %v2276
        %v2278 = vpop.f32.mrb[0].mxu0
        %v2279 = vadd.f32 0.0, %v2278
        %v2280 = vpop.f32.mrb[0].mxu0
        %v2281 = vadd.f32 0.0, %v2280
        %2282 = vdwg.mxu0
        %v2283 = vld [vmem:[#allocation2] sm:$0xff]
        %v2284 = vld [vmem:[#allocation2 + $0x8] sm:$0xff]
        %v2285 = vld [vmem:[#allocation2 + $0x10] sm:$0xff]
        %v2286 = vld [vmem:[#allocation2 + $0x18] sm:$0xff]
        %v2287 = vld [vmem:[#allocation2 + $0x20] sm:$0xff]
        %v2288 = vld [vmem:[#allocation2 + $0x28] sm:$0xff]
        %v2289 = vld [vmem:[#allocation2 + $0x30] sm:$0xff]
        %v2290 = vld [vmem:[#allocation2 + $0x38] sm:$0xff]
        %v2291 = vld [vmem:[#allocation2 + $0x40] sm:$0xff]
        %v2292 = vld [vmem:[#allocation2 + $0x48] sm:$0xff]
        %v2293 = vld [vmem:[#allocation2 + $0x50] sm:$0xff]
        %v2294 = vld [vmem:[#allocation2 + $0x58] sm:$0xff]
        %v2295 = vld [vmem:[#allocation2 + $0x60] sm:$0xff]
        %v2296 = vld [vmem:[#allocation2 + $0x68] sm:$0xff]
        %v2297 = vld [vmem:[#allocation2 + $0x70] sm:$0xff]
        %v2298 = vld [vmem:[#allocation2 + $0x78] sm:$0xff]
        %v2299 = vld [vmem:[#allocation2 + $0x80] sm:$0xff]
        %v2300 = vld [vmem:[#allocation2 + $0x88] sm:$0xff]
        %v2301 = vld [vmem:[#allocation2 + $0x90] sm:$0xff]
        %v2302 = vld [vmem:[#allocation2 + $0x98] sm:$0xff]
        %v2303 = vld [vmem:[#allocation2 + $0xa0] sm:$0xff]
        %v2304 = vld [vmem:[#allocation2 + $0xa8] sm:$0xff]
        %v2305 = vld [vmem:[#allocation2 + $0xb0] sm:$0xff]
        %v2306 = vld [vmem:[#allocation2 + $0xb8] sm:$0xff]
        %v2307 = vld [vmem:[#allocation2 + $0xc0] sm:$0xff]
        %v2308 = vld [vmem:[#allocation2 + $0xc8] sm:$0xff]
        %v2309 = vld [vmem:[#allocation2 + $0xd0] sm:$0xff]
        %v2310 = vld [vmem:[#allocation2 + $0xd8] sm:$0xff]
        %v2311 = vld [vmem:[#allocation2 + $0xe0] sm:$0xff]
        %v2312 = vld [vmem:[#allocation2 + $0xe8] sm:$0xff]
        %v2313 = vld [vmem:[#allocation2 + $0xf0] sm:$0xff]
        %v2314 = vld [vmem:[#allocation2 + $0xf8] sm:$0xff]
        %v2315 = vadd.f32 %v2283, %v2205
        %v2316 = vadd.f32 %v2284, %v2207
        %v2317 = vadd.f32 %v2285, %v2209
        %v2318 = vadd.f32 %v2286, %v2211
        %v2319 = vadd.f32 %v2287, %v2215
        %v2320 = vadd.f32 %v2288, %v2217
        %v2321 = vadd.f32 %v2289, %v2219
        %v2322 = vadd.f32 %v2290, %v2221
        %v2323 = vadd.f32 %v2291, %v2225
        %v2324 = vadd.f32 %v2292, %v2227
        %v2325 = vadd.f32 %v2293, %v2229
        %v2326 = vadd.f32 %v2294, %v2231
        %v2327 = vadd.f32 %v2295, %v2235
        %v2328 = vadd.f32 %v2296, %v2237
        %v2329 = vadd.f32 %v2297, %v2239
        %v2330 = vadd.f32 %v2298, %v2241
        %v2331 = vadd.f32 %v2299, %v2245
        %v2332 = vadd.f32 %v2300, %v2247
        %v2333 = vadd.f32 %v2301, %v2249
        %v2334 = vadd.f32 %v2302, %v2251
        %v2335 = vadd.f32 %v2303, %v2255
        %v2336 = vadd.f32 %v2304, %v2257
        %v2337 = vadd.f32 %v2305, %v2259
        %v2338 = vadd.f32 %v2306, %v2261
        %v2339 = vadd.f32 %v2307, %v2265
        %v2340 = vadd.f32 %v2308, %v2267
        %v2341 = vadd.f32 %v2309, %v2269
        %v2342 = vadd.f32 %v2310, %v2271
        %v2343 = vadd.f32 %v2311, %v2275
        %v2344 = vadd.f32 %v2312, %v2277
        %v2345 = vadd.f32 %v2313, %v2279
        %v2346 = vadd.f32 %v2314, %v2281
        %2347 = vst [vmem:[#allocation2] sm:$0xff] %v2315
        %2348 = vst [vmem:[#allocation2 + $0x8] sm:$0xff] %v2316
        %2349 = vst [vmem:[#allocation2 + $0x10] sm:$0xff] %v2317
        %2350 = vst [vmem:[#allocation2 + $0x18] sm:$0xff] %v2318
        %2351 = vst [vmem:[#allocation2 + $0x20] sm:$0xff] %v2319
        %2352 = vst [vmem:[#allocation2 + $0x28] sm:$0xff] %v2320
        %2353 = vst [vmem:[#allocation2 + $0x30] sm:$0xff] %v2321
        %2354 = vst [vmem:[#allocation2 + $0x38] sm:$0xff] %v2322
        %2355 = vst [vmem:[#allocation2 + $0x40] sm:$0xff] %v2323
        %2356 = vst [vmem:[#allocation2 + $0x48] sm:$0xff] %v2324
        %2357 = vst [vmem:[#allocation2 + $0x50] sm:$0xff] %v2325
        %2358 = vst [vmem:[#allocation2 + $0x58] sm:$0xff] %v2326
        %2359 = vst [vmem:[#allocation2 + $0x60] sm:$0xff] %v2327
        %2360 = vst [vmem:[#allocation2 + $0x68] sm:$0xff] %v2328
        %2361 = vst [vmem:[#allocation2 + $0x70] sm:$0xff] %v2329
        %2362 = vst [vmem:[#allocation2 + $0x78] sm:$0xff] %v2330
        %2363 = vst [vmem:[#allocation2 + $0x80] sm:$0xff] %v2331
        %2364 = vst [vmem:[#allocation2 + $0x88] sm:$0xff] %v2332
        %2365 = vst [vmem:[#allocation2 + $0x90] sm:$0xff] %v2333
        %2366 = vst [vmem:[#allocation2 + $0x98] sm:$0xff] %v2334
        %2367 = vst [vmem:[#allocation2 + $0xa0] sm:$0xff] %v2335
        %2368 = vst [vmem:[#allocation2 + $0xa8] sm:$0xff] %v2336
        %2369 = vst [vmem:[#allocation2 + $0xb0] sm:$0xff] %v2337
        %2370 = vst [vmem:[#allocation2 + $0xb8] sm:$0xff] %v2338
        %2371 = vst [vmem:[#allocation2 + $0xc0] sm:$0xff] %v2339
        %2372 = vst [vmem:[#allocation2 + $0xc8] sm:$0xff] %v2340
        %2373 = vst [vmem:[#allocation2 + $0xd0] sm:$0xff] %v2341
        %2374 = vst [vmem:[#allocation2 + $0xd8] sm:$0xff] %v2342
        %2375 = vst [vmem:[#allocation2 + $0xe0] sm:$0xff] %v2343
        %2376 = vst [vmem:[#allocation2 + $0xe8] sm:$0xff] %v2344
        %2377 = vst [vmem:[#allocation2 + $0xf0] sm:$0xff] %v2345
        %2378 = vst [vmem:[#allocation2 + $0xf8] sm:$0xff] %v2346
        %v2379 = vand.u32 2147483647, %v842
        %v2380 = vand.u32 2147483647, %v844
        %v2381 = vand.u32 2147483647, %v846
        %v2382 = vand.u32 2147483647, %v848
        %v2383 = vsub.f32 0.0, %v2379
        %v2384 = vsub.f32 0.0, %v2380
        %v2385 = vsub.f32 0.0, %v2381
        %v2386 = vsub.f32 0.0, %v2382
        %v2387 = vmul.f32 %v2383, 1.442695
        %v2388 = vpow.pop %v2387
        %v2389 = vmul.f32 %v2384, 1.442695
        %v2390 = vpow.pop %v2389
        %v2391 = vmul.f32 %v2385, 1.442695
        %v2392 = vpow.pop %v2391
        %v2393 = vmul.f32 %v2386, 1.442695
        %v2394 = vpow.pop %v2393
        %vm2395 = vcmp.ge.f32.partialorder %v842, 0.0
        %vm2396 = vcmp.ge.f32.partialorder %v844, 0.0
        %vm2397 = vcmp.ge.f32.partialorder %v846, 0.0
        %vm2398 = vcmp.ge.f32.partialorder %v848, 0.0
        %v2399 = vadd.f32 %v2388, 1.0
        %v2400 = vadd.f32 %v2390, 1.0
        %v2401 = vadd.f32 %v2392, 1.0
        %v2402 = vadd.f32 %v2394, 1.0
        %v2403 = vrcp.pop %v2399
        %v2404 = vmul.f32 1.0, %v2403
        %v2405 = vrcp.pop %v2400
        %v2406 = vmul.f32 1.0, %v2405
        %v2407 = vrcp.pop %v2401
        %v2408 = vmul.f32 1.0, %v2407
        %v2409 = vrcp.pop %v2402
        %v2410 = vmul.f32 1.0, %v2409
        %v2411 = vmul.f32 %v2388, %v2403
        %v2412 = vmul.f32 %v2390, %v2405
        %v2413 = vmul.f32 %v2392, %v2407
        %v2414 = vmul.f32 %v2394, %v2409
        %v2415 = vsel %vm2395, %v2404, %v2411
        %v2416 = vsel %vm2396, %v2406, %v2412
        %v2417 = vsel %vm2397, %v2408, %v2413
        %v2418 = vsel %vm2398, %v2410, %v2414
        %v2419 = vmul.f32 %v842, %v2415
        %v2420 = vmul.f32 %v844, %v2416
        %v2421 = vmul.f32 %v846, %v2417
        %v2422 = vmul.f32 %v848, %v2418
        %v2423 = vmul.f32 %v1905, %v2419
        %v2424 = vmul.f32 %v2063, %v2420
        %v2425 = vmul.f32 %v1906, %v2421
        %v2426 = vmul.f32 %v2064, %v2422
        %v2427 = vmul.f32 %v2423, %v2423
        %v2428 = vmul.f32 %v2424, %v2424
        %v2429 = vmul.f32 %v2425, %v2425
        %v2430 = vmul.f32 %v2426, %v2426
        %v2431 = vadd.f32 %v2427, %v2428
        %2432 = vadd.xlane.f32.xlu0 %v2431
        %v2433 = vpop.xlane.xlu0 %2432
        %v2434 = vadd.f32 %v2429, %v2430
        %2435 = vadd.xlane.f32.xlu0 %v2434
        %v2436 = vpop.xlane.xlu0 %2435
        %v2437 = vrcp.pop 256.0
        %v2438 = vmul.f32 %v2433, %v2437
        %v2439 = vmul.f32 %v2436, %v2437
        %v2440 = vadd.f32 %v2438, 1e-05
        %v2441 = vadd.f32 %v2439, 1e-05
        %v2442 = vrsqrt.pop %v2440
        %v2443 = vrsqrt.pop %v2441
        %v2444 = vmul.f32 %v2423, %v2442
        %v2445 = vmul.f32 %v2424, %v2442
        %v2446 = vmul.f32 %v2425, %v2443
        %v2447 = vmul.f32 %v2426, %v2443
        %v2448 = vld [vmem:[%s7] sm:$0x3]
        %v2450 = vlaneseq
        %v2451 = vshrl.u32 %v2450, 7
        %v2452 = vsub.s32 0, %v2451
        %v2453 = vrot.slane %v2448, %v2452
        %v2454 = vlaneseq
        %v2455 = vshrl.u32 %v2454, 7
        %v2456 = vsub.s32 1, %v2455
        %v2457 = vrot.slane %v2448, %v2456
        %v2460 = vmul.f32 %v2444, %v2453
        %v2461 = vmul.f32 %v2445, %v2457
        %v2462 = vmul.f32 %v2446, %v2453
        %v2463 = vmul.f32 %v2447, %v2457
        %v2464 = vpack.c.bf16 %v2462, %v2460
        %v2465 = vpack.c.bf16 %v2463, %v2461
        %v2466 = vld [vmem:[#allocation9] sm:$0xf]
        %v2467 = vld [vmem:[#allocation9 + $0x4] sm:$0xf]
        %v2468 = vld [vmem:[#allocation9 + $0x8] sm:$0xf]
        %v2469 = vld [vmem:[#allocation9 + $0xc] sm:$0xf]
        %v2470 = vld [vmem:[#allocation9 + $0x10] sm:$0xf]
        %v2471 = vld [vmem:[#allocation9 + $0x14] sm:$0xf]
        %v2472 = vld [vmem:[#allocation9 + $0x18] sm:$0xf]
        %v2473 = vld [vmem:[#allocation9 + $0x1c] sm:$0xf]
        %v2474 = vld [vmem:[#allocation9 + $0x20] sm:$0xf]
        %v2475 = vld [vmem:[#allocation9 + $0x24] sm:$0xf]
        %v2476 = vld [vmem:[#allocation9 + $0x28] sm:$0xf]
        %v2477 = vld [vmem:[#allocation9 + $0x2c] sm:$0xf]
        %v2478 = vld [vmem:[#allocation9 + $0x30] sm:$0xf]
        %v2479 = vld [vmem:[#allocation9 + $0x34] sm:$0xf]
        %v2480 = vld [vmem:[#allocation9 + $0x38] sm:$0xf]
        %v2481 = vld [vmem:[#allocation9 + $0x3c] sm:$0xf]
        %v2482 = vld [vmem:[#allocation9 + $0x40] sm:$0xf]
        %v2483 = vld [vmem:[#allocation9 + $0x44] sm:$0xf]
        %v2484 = vld [vmem:[#allocation9 + $0x48] sm:$0xf]
        %v2485 = vld [vmem:[#allocation9 + $0x4c] sm:$0xf]
        %v2486 = vld [vmem:[#allocation9 + $0x50] sm:$0xf]
        %v2487 = vld [vmem:[#allocation9 + $0x54] sm:$0xf]
        %v2488 = vld [vmem:[#allocation9 + $0x58] sm:$0xf]
        %v2489 = vld [vmem:[#allocation9 + $0x5c] sm:$0xf]
        %v2490 = vld [vmem:[#allocation9 + $0x60] sm:$0xf]
        %v2491 = vld [vmem:[#allocation9 + $0x64] sm:$0xf]
        %v2492 = vld [vmem:[#allocation9 + $0x68] sm:$0xf]
        %v2493 = vld [vmem:[#allocation9 + $0x6c] sm:$0xf]
        %v2494 = vld [vmem:[#allocation9 + $0x70] sm:$0xf]
        %v2495 = vld [vmem:[#allocation9 + $0x74] sm:$0xf]
        %v2496 = vld [vmem:[#allocation9 + $0x78] sm:$0xf]
        %v2497 = vld [vmem:[#allocation9 + $0x7c] sm:$0xf]
        %v2530 = vunpack.c.l.b16 %v2466
        %v2531 = vunpack.c.l.b16 %v2467
        %v2532 = vunpack.c.l.b16 %v2468
        %v2533 = vunpack.c.l.b16 %v2469
        %v2534 = vunpack.c.l.b16 %v2470
        %v2535 = vunpack.c.l.b16 %v2471
        %v2536 = vunpack.c.l.b16 %v2472
        %v2537 = vunpack.c.l.b16 %v2473
        %v2538 = vunpack.c.l.b16 %v2474
        %v2539 = vunpack.c.l.b16 %v2475
        %v2540 = vunpack.c.l.b16 %v2476
        %v2541 = vunpack.c.l.b16 %v2477
        %v2542 = vunpack.c.l.b16 %v2478
        %v2543 = vunpack.c.l.b16 %v2479
        %v2544 = vunpack.c.l.b16 %v2480
        %v2545 = vunpack.c.l.b16 %v2481
        %v2546 = vunpack.c.l.b16 %v2482
        %v2547 = vunpack.c.l.b16 %v2483
        %v2548 = vunpack.c.l.b16 %v2484
        %v2549 = vunpack.c.l.b16 %v2485
        %v2550 = vunpack.c.l.b16 %v2486
        %v2551 = vunpack.c.l.b16 %v2487
        %v2552 = vunpack.c.l.b16 %v2488
        %v2553 = vunpack.c.l.b16 %v2489
        %v2554 = vunpack.c.l.b16 %v2490
        %v2555 = vunpack.c.l.b16 %v2491
        %v2556 = vunpack.c.l.b16 %v2492
        %v2557 = vunpack.c.l.b16 %v2493
        %v2558 = vunpack.c.l.b16 %v2494
        %v2559 = vunpack.c.l.b16 %v2495
        %v2560 = vunpack.c.l.b16 %v2496
        %v2561 = vunpack.c.l.b16 %v2497
        %v2562 = vpack.c.b16 %v2531, %v2530
        %v2563 = vpack.c.b16 %v2533, %v2532
        %v2564 = vpack.c.b16 %v2535, %v2534
        %v2565 = vpack.c.b16 %v2537, %v2536
        %v2566 = vpack.c.b16 %v2539, %v2538
        %v2567 = vpack.c.b16 %v2541, %v2540
        %v2568 = vpack.c.b16 %v2543, %v2542
        %v2569 = vpack.c.b16 %v2545, %v2544
        %v2570 = vpack.c.b16 %v2547, %v2546
        %v2571 = vpack.c.b16 %v2549, %v2548
        %v2572 = vpack.c.b16 %v2551, %v2550
        %v2573 = vpack.c.b16 %v2553, %v2552
        %v2574 = vpack.c.b16 %v2555, %v2554
        %v2575 = vpack.c.b16 %v2557, %v2556
        %v2576 = vpack.c.b16 %v2559, %v2558
        %v2577 = vpack.c.b16 %v2561, %v2560
        %2594 = vmatprep.subr.bf16.mxu0 0
        %2595 = vmatpush1.bf16.msra.mxu0 %v2562
        %2596 = vmatprep.subr.bf16.mxu0 0
        %2597 = vmatpush1.bf16.msra.mxu0 %v2563
        %2598 = vmatprep.subr.bf16.mxu0 0
        %2599 = vmatpush1.bf16.msra.mxu0 %v2564
        %2600 = vmatprep.subr.bf16.mxu0 0
        %2601 = vmatpush1.bf16.msra.mxu0 %v2565
        %2602 = vmatprep.subr.bf16.mxu0 0
        %2603 = vmatpush1.bf16.msra.mxu0 %v2566
        %2604 = vmatprep.subr.bf16.mxu0 0
        %2605 = vmatpush1.bf16.msra.mxu0 %v2567
        %2606 = vmatprep.subr.bf16.mxu0 0
        %2607 = vmatpush1.bf16.msra.mxu0 %v2568
        %2608 = vmatprep.subr.bf16.mxu0 0
        %2609 = vmatpush1.bf16.msra.mxu0 %v2569
        %2610 = vmatprep.subr.bf16.mxu0 0
        %2611 = vmatpush1.bf16.msra.mxu0 %v2570
        %2612 = vmatprep.subr.bf16.mxu0 0
        %2613 = vmatpush1.bf16.msra.mxu0 %v2571
        %2614 = vmatprep.subr.bf16.mxu0 0
        %2615 = vmatpush1.bf16.msra.mxu0 %v2572
        %2616 = vmatprep.subr.bf16.mxu0 0
        %2617 = vmatpush1.bf16.msra.mxu0 %v2573
        %2618 = vmatprep.subr.bf16.mxu0 0
        %2619 = vmatpush1.bf16.msra.mxu0 %v2574
        %2620 = vmatprep.subr.bf16.mxu0 0
        %2621 = vmatpush1.bf16.msra.mxu0 %v2575
        %2622 = vmatprep.subr.bf16.mxu0 0
        %2623 = vmatpush1.bf16.msra.mxu0 %v2576
        %2624 = vmatprep.subr.bf16.mxu0 0
        %2625 = vmatpush1.bf16.msra.mxu0 %v2577
        %2626 = vmatprep.mubr.bf16.mxu0 %v2465
        %2627 = vmatmul.mubr.bf16.gmra.mrb[0].mxu0 %v2464
        %v2628 = vpop.f32.mrb[0].mxu0
        %v2629 = vadd.f32 0.0, %v2628
        %v2630 = vpop.f32.mrb[0].mxu0
        %v2631 = vpop.f32.mrb[0].mxu0
        %v2632 = vadd.f32 0.0, %v2631
        %v2633 = vpop.f32.mrb[0].mxu0
        %2634 = vdwg.mxu0
        %2635 = vst [vmem:[%s394] sm:$0xff] %v2629
        %2636 = vst [vmem:[%s394 + $0x8] sm:$0xff] %v2632
        %s2637 = sand.u32 %s244, 1
        %s2638 = scalar_lea.sflag [#allocation6], %s2637
        %s2639 = sand.u32 %s244, 1
        %s2640 = smul.addr %s2639, 16
        %s2641 = scalar_lea.vmem [#allocation11], %s2640
        // Predicated region
        $region73: #{mamba2_forward.1} parent=55 // pred_check
          %p2642 = pneg %p254
        $region74: #{mamba2_forward.1} parent=55 // pred_check_branch
          %2644 = sbr.rel (%p2642) target = $region76
        $region75: #{mamba2_forward.1} parent=55 // pred_region
          %s2645 = smul.u32 2, %s31
          %s2647 = ssub.s32 256, 256
          %2648 = vsyncadd %s2638, %s2647
          %s2649 = smul.addr %s30, 4
          %s2650 = sadd.s32 %s2645, %s2649
          %s2651 = smul.addr %s2650, 128
          %s2652 = scalar_lea.hbm %s9, %s2651
          %s2653 = sshll.u32 %s2641, 4
          %s2654 = int_to_ptr.vmem [resolvable:$true] %s2653
          %2659 = dma.vmem_to_hbm [thread:$0]  %s2654, 256, %s2652, %s2638, 128, 128, 8
        $region76: #{mamba2_forward.1} parent=55 // pred_fallthru
          _
      $region56: #{mamba2_forward.1} parent=5 // pred_fallthru
        _
      %p2660 = scmp.le.s32.totalorder 2, %s21
      // Predicated region
      $region77: #{mamba2_forward.1} parent=5 // pred_check
        %p2661 = pneg %p2660
      $region78: #{mamba2_forward.1} parent=5 // pred_check_branch
        %2663 = sbr.rel (%p2661) target = $region80
      $region79: #{mamba2_forward.1} parent=5 // pred_region
        %s2664 = ssub.s32 %s21, 2
        // Predicated region
        $region81: #{mamba2_forward.1} parent=79 // pred_check
          %p2665 = pneg %p260
        $region82: #{mamba2_forward.1} parent=79 // pred_check_branch
          %2667 = sbr.rel (%p2665) target = $region84
        $region83: #{mamba2_forward.1} parent=79 // pred_region
          %s2668 = sand.u32 %s245, 1
          %s2669 = scalar_lea.sflag [#allocation6], %s2668
          %s2670 = sand.u32 %s245, 1
          %s2671 = smul.addr %s2670, 16
          %s2672 = scalar_lea.vmem [#allocation11], %s2671
          %2673 = dma.done %s2669, 256
        $region84: #{mamba2_forward.1} parent=79 // pred_fallthru
          _
      $region80: #{mamba2_forward.1} parent=5 // pred_fallthru
        _
    $region6: #{mamba2_forward.1} parent=1 // loop_footer
      %s25 = sadd.s32 1, %s21
    $region7: #{mamba2_forward.1} parent=1 // loop_footer_branch
      %20 = sbr.rel target = $region3
    $region8: #{mamba2_forward.1} parent=1 // loop_exit
      _
    %2674 = vsyncpa [#allocation5], 1
    %s2675 = scalar_lea.sflag [#allocation5], 1
    %2676 = vsyncpa %s2675, 1
    %2677 = vsyncpa [#allocation10], 1
    %2678 = vsyncpa [#allocation6], 1
    %s2679 = scalar_lea.sflag [#allocation6], 1
    %2680 = vsyncpa %s2679, 1
    %2681 = vsyncpa [#allocation7], 1
    %s2682 = scalar_lea.sflag [#allocation7], 1
    %2683 = vsyncpa %s2682, 1

</llo_original>
